<compile_context>
chip_gen: v7x
topology: tpu7x:2x2x1
jax: 0.10.0
libtpu: 0.0.40
codegen_flags: <defaults>
</compile_context>

<pallas_src>
import functools

import jax
import jax.numpy as jnp
import numpy as np
from jax import lax
from jax.experimental import pallas as pl
from jax.experimental.pallas import tpu as pltpu

NEG_INF = -1e30  # finite "minus infinity" avoids inf-inf NaNs in the rescale


def _round_up(x, m):
    return ((x + m - 1) // m) * m


def _default_num_cores():
    # v7x has 2 TensorCores per chip; split the bag across them via a
    # "parallel" leading grid axis.  v5e/v6e have a single TC.
    try:
        kind = jax.devices()[0].device_kind.lower()
    except Exception:
        return 1
    return 2 if "v7" in kind else 1


def mil_bag_kernel(tile_n, tiles_per_core, neg_inf,
                   nvalid_ref,
                   feat_ref, w_score_ref, b_score_ref, w_a2t_ref, b_a2_ref,
                   scores_ref, m_ref, l_ref, acc_ref):
    """Streams feats tiles; per-core online softmax partials + raw logits."""
    c = pl.program_id(0)          # core slice of the bag ("parallel")
    i = pl.program_id(1)          # tile within this core's slice ("arbitrary")
    n_valid = nvalid_ref[0]

    @pl.when(i == 0)
    def _init():
        m_ref[0] = jnp.full(m_ref.shape[1:], neg_inf, m_ref.dtype)
        l_ref[0] = jnp.zeros(l_ref.shape[1:], l_ref.dtype)
        acc_ref[0] = jnp.zeros(acc_ref.shape[1:], acc_ref.dtype)

    # True global row offset of this tile.  (The feats index_map clamps
    # trailing "imaginary" tiles onto the last real block; the masking below —
    # based on the *unclamped* offset — zeroes their contribution entirely.)
    row0 = (c * tiles_per_core + i) * tile_n

    feats = feat_ref[...]                                              # [T, F]
    # Zero rows past the bag end (partial edge tile / imaginary tiles): p==0
    # for masked columns does NOT protect the p @ feats matmul from 0*NaN on
    # undefined VMEM, so the rows themselves must be zeroed.
    row = row0 + lax.broadcasted_iota(jnp.int32, (tile_n, 1), 0)
    feats = jnp.where(row < n_valid, feats, 0.0)

    # Fused embedding + attention layer1:  tanh(feats @ (w_emb@w_a1) + b_fused)
    h = jnp.tanh(jnp.dot(feats, w_score_ref[...],
                         preferred_element_type=jnp.float32)
                 + b_score_ref[...])                                   # [T, D] f32

    # Attention layer2, produced directly in [K, T] (bag dim lane-dense).
    s = lax.dot_general(w_a2t_ref[...], h.astype(feats.dtype),
                        (((1,), (1,)), ((), ())),
                        preferred_element_type=jnp.float32) + b_a2_ref[...]

    scores_ref[...] = s      # raw logits; padded columns discarded by wrapper

    # Mask padded bag positions, then online (flash-style) softmax over bag dim.
    col = row0 + lax.broadcasted_iota(jnp.int32, s.shape, 1)
    s = jnp.where(col < n_valid, s, neg_inf)

    m_prev = m_ref[0]                                                  # [K, 1]
    m_new = jnp.maximum(m_prev, jnp.max(s, axis=1, keepdims=True))
    alpha = jnp.exp(m_prev - m_new)
    p = jnp.exp(s - m_new)                                             # [K, T]
    l_ref[0] = alpha * l_ref[0] + jnp.sum(p, axis=1, keepdims=True)
    acc_ref[0] = alpha * acc_ref[0] + jnp.dot(
        p.astype(feats.dtype), feats, preferred_element_type=jnp.float32)
    m_ref[0] = m_new


def mil_head_kernel(num_classes, num_cores,
                    m_ref, l_ref, acc_ref,
                    w_emb_ref, b_emb_ref, w_bfc_ref, b_bfc_ref,
                    w_fc_ref, b_fc_ref, yprob_ref):
    """Merges per-core flash-softmax partials and runs the classifier head."""
    m = m_ref[0]
    for cidx in range(1, num_cores):
        m = jnp.maximum(m, m_ref[cidx])
    l = jnp.zeros_like(l_ref[0])
    acc = jnp.zeros_like(acc_ref[0])
    for cidx in range(num_cores):
        scale = jnp.exp(m_ref[cidx] - m)                               # [K, 1]
        l = l + scale * l_ref[cidx]
        acc = acc + scale * acc_ref[cidx]

    a_feats = acc / l                                     # [K, F] = A @ feats
    # wsi = A @ emb = (A @ feats) @ w_emb + b_emb   (softmax rows sum to 1)
    wsi = jnp.dot(a_feats, w_emb_ref[...],
                  preferred_element_type=jnp.float32) + b_emb_ref[...]  # [K, E]
    # embedding_before_fc on the row-major flatten of wsi; w_bfc is [K, E, E].
    cls = b_bfc_ref[...]                                               # [1, E]
    for k in range(num_classes):
        cls = cls + jnp.dot(wsi[k:k + 1, :], w_bfc_ref[k],
                            preferred_element_type=jnp.float32)
    cls = jnp.maximum(cls, 0.0)                    # ReLU (dropout == identity)
    yprob_ref[...] = jnp.dot(cls, w_fc_ref[...],
                             preferred_element_type=jnp.float32) + b_fc_ref[...]


def mil_forward(conv_layers_out, params, *, tile_n=1024, num_cores=None,
                n_valid=None):
    """MIL_model.forward(None, conv_layers_out) -> (Y_prob, A)."""
    N, F = conv_layers_out.shape
    E = params["w_emb"].shape[1]
    D = params["w_a1"].shape[1]
    K = params["w_a2"].shape[1]
    if n_valid is None:
        n_valid = N                      # rows of the buffer actually in use
    # Feats are ingested exactly as produced (no wrapper cast/pad pass); pass
    # bf16 feats from the backbone to halve the dominant HBM stream.
    compute_dtype = conv_layers_out.dtype
    itemsize = jnp.dtype(compute_dtype).itemsize

    tile_n = _round_up(max(int(tile_n), 128), 128)
    tile_n = min(tile_n, _round_up(N, 128))      # small bags -> one grid step
    num_tiles = pl.cdiv(N, tile_n)

    if num_cores is None:
        num_cores = _default_num_cores()
    num_cores = max(1, min(int(num_cores), num_tiles))
    tiles_per_core = pl.cdiv(num_tiles, num_cores)
    n_cols = num_cores * tiles_per_core * tile_n   # lane-padded score columns

    hi = lax.Precision.HIGHEST
    # Fused score-path weights (no nonlinearity between embedding & attn L1);
    # fused in f32, the product cast once to the feats dtype for the MXU.
    w_score = jnp.dot(params["w_emb"], params["w_a1"],
                      precision=hi).astype(compute_dtype)              # [F, D]
    b_score = (jnp.dot(params["b_emb"], params["w_a1"], precision=hi)
               + params["b_a1"]).astype(jnp.float32)                   # [1, D]
    w_a2_t = params["w_a2"].T.astype(compute_dtype)                    # [K, D]
    b_a2_c = params["b_a2"].T.astype(jnp.float32)                      # [K, 1]

    # VMEM budget: double-buffered feats + scores tiles, the masked-feats temp,
    # h, resident weights and the per-core partials.  Keep >=32 MiB (v5e's
    # 16 MiB default scope would otherwise cap tile size) and <=64 MiB (v7x
    # physical VMEM per TensorCore).
    vmem_est = (4 * tile_n * F * itemsize
                + tile_n * D * 4
                + 4 * K * tile_n * 4
                + 2 * ((F + K) * D * itemsize + (D + K) * 4)
                + 4 * K * (F + 2) * 4
                + (4 << 20))
    vmem_limit = int(min(max(vmem_est, 32 << 20), 64 << 20))

    def const(c, i, nv):
        return (0, 0)

    grid_spec = pltpu.PrefetchScalarGridSpec(
        num_scalar_prefetch=1,
        grid=(num_cores, tiles_per_core),
        in_specs=[
            # feats, tiled over the bag; imaginary trailing tiles are clamped
            # onto the last real block (their rows are zeroed in-kernel).
            pl.BlockSpec((tile_n, F),
                         lambda c, i, nv: (jnp.minimum(c * tiles_per_core + i,
                                                       num_tiles - 1), 0)),
            pl.BlockSpec((F, D), const),       # fused score weight (resident)
            pl.BlockSpec((1, D), const),       # fused score bias
            pl.BlockSpec((K, D), const),       # w_a2^T
            pl.BlockSpec((K, 1), const),       # b_a2 (column)
        ],
        out_specs=(
            # raw logits, lane-dense [K, n_cols]
            pl.BlockSpec((K, tile_n),
                         lambda c, i, nv: (0, c * tiles_per_core + i)),
            # per-core online-softmax partials (resident across inner axis)
            pl.BlockSpec((1, K, 1), lambda c, i, nv: (c, 0, 0)),   # running max
            pl.BlockSpec((1, K, 1), lambda c, i, nv: (c, 0, 0)),   # running sum
            pl.BlockSpec((1, K, F), lambda c, i, nv: (c, 0, 0)),   # running A@feats
        ),
    )

    scores, m_part, l_part, acc_part = pl.pallas_call(
        functools.partial(mil_bag_kernel, tile_n, tiles_per_core, NEG_INF),
        grid_spec=grid_spec,
        out_shape=(
            jax.ShapeDtypeStruct((K, n_cols), jnp.float32),
            jax.ShapeDtypeStruct((num_cores, K, 1), jnp.float32),
            jax.ShapeDtypeStruct((num_cores, K, 1), jnp.float32),
            jax.ShapeDtypeStruct((num_cores, K, F), jnp.float32),
        ),
        compiler_params=pltpu.CompilerParams(
            dimension_semantics=("parallel", "arbitrary"),
            vmem_limit_bytes=vmem_limit),
    )(jnp.array([n_valid], jnp.int32), conv_layers_out,
      w_score, b_score, w_a2_t, b_a2_c)

    # Tiny single-shot kernel: merge per-core partials + classifier head.
    f32 = jnp.float32
    yprob = pl.pallas_call(
        functools.partial(mil_head_kernel, K, num_cores),
        out_shape=jax.ShapeDtypeStruct((1, K), jnp.float32),
    )(m_part, l_part, acc_part,
      params["w_emb"].astype(f32), params["b_emb"].astype(f32),
      params["w_bfc"].astype(f32), params["b_bfc"].astype(f32),
      params["w_fc"].astype(f32), params["b_fc"].astype(f32))

    Y_prob = jnp.squeeze(yprob)                         # [K]  (torch.squeeze)
    # Padded logit columns are garbage by construction; slice to the valid bag
    # before the (tiny) softmax.
    A = jax.nn.softmax(scores[:, :n_valid], axis=1)     # [K, N]
    return Y_prob, A


def ref_forward(x, p):
    """Pure-JAX reference mirroring the PyTorch forward (inference mode)."""
    hi = lax.Precision.HIGHEST
    emb = jnp.dot(x, p["w_emb"], precision=hi) + p["b_emb"]
    h = jnp.tanh(jnp.dot(emb, p["w_a1"], precision=hi) + p["b_a1"])
    att = jnp.dot(h, p["w_a2"], precision=hi) + p["b_a2"]
    A = jax.nn.softmax(att.T, axis=1)                   # [K, N]
    wsi = jnp.dot(A, emb, precision=hi)                 # [K, E]
    K, E = wsi.shape
    flat = wsi.reshape(1, K * E)
    cls = jnp.maximum(jnp.dot(flat, p["w_bfc"].reshape(K * E, E), precision=hi)
                      + p["b_bfc"], 0.0)
    y = jnp.dot(cls, p["w_fc"], precision=hi) + p["b_fc"]
    return jnp.squeeze(y), A


if __name__ == "__main__":
    # N = instances per bag, F = fc_input_features, E = hidden_space_len (=L=D),
    # K = num_classes.  N is deliberately NOT a multiple of 128 so the in-kernel
    # edge-tile masking path is exercised.
    N, F, E, K = 600, 256, 64, 4
    D = E

    key = jax.random.PRNGKey(0)
    ks = jax.random.split(key, 12)
    s = 0.1
    params = {
        "w_emb": jax.random.normal(ks[0], (F, E), jnp.float32) * s,
        "b_emb": jax.random.normal(ks[1], (1, E), jnp.float32) * s,
        "w_a1":  jax.random.normal(ks[2], (E, D), jnp.float32) * s,
        "b_a1":  jax.random.normal(ks[3], (1, D), jnp.float32) * s,
        "w_a2":  jax.random.normal(ks[4], (D, K), jnp.float32) * s,
        "b_a2":  jax.random.normal(ks[5], (1, K), jnp.float32) * s,
        # embedding_before_fc weight, pre-transposed and reshaped to [K, E, E]
        "w_bfc": jax.random.normal(ks[6], (K, E, E), jnp.float32) * s,
        "b_bfc": jax.random.normal(ks[7], (1, E), jnp.float32) * s,
        "w_fc":  jax.random.normal(ks[8], (E, K), jnp.float32) * s,
        "b_fc":  jax.random.normal(ks[9], (1, K), jnp.float32) * s,
    }

    conv_layers_out = jax.random.normal(ks[10], (N, F), jnp.float32)
    Y_ref, A_ref = ref_forward(conv_layers_out, params)

    # 1) f32 feats, defaults: single grid step for this bag (tile_n clamped).
    Y1, A1 = mil_forward(conv_layers_out, params)
    jax.block_until_ready((Y1, A1))
    np.testing.assert_allclose(np.asarray(Y1), np.asarray(Y_ref),
                               rtol=1e-4, atol=1e-5)
    np.testing.assert_allclose(np.asarray(A1), np.asarray(A_ref),
                               rtol=1e-4, atol=1e-5)

    # 2) Multi-tile + explicit 2-core partial-softmax path (also exercises the
    #    clamped imaginary tile, the in-kernel row masking and the head-kernel
    #    merge).  Runs correctly — just serialized — on 1-TC chips.
    Y2, A2 = mil_forward(conv_layers_out, params, tile_n=128, num_cores=2)
    jax.block_until_ready((Y2, A2))
    np.testing.assert_allclose(np.asarray(Y2), np.asarray(Y_ref),
                               rtol=1e-4, atol=1e-5)
    np.testing.assert_allclose(np.asarray(A2), np.asarray(A_ref),
                               rtol=1e-4, atol=1e-5)

    # 3) bf16 feats "straight from the backbone" (no wrapper cast pass inside
    #    mil_forward): halves the dominant HBM stream on v5e/v6e/v7x; f32
    #    accumulation / tanh / exp keep it close to the f32 reference.
    Y3, A3 = mil_forward(conv_layers_out.astype(jnp.bfloat16), params)
    jax.block_until_ready((Y3, A3))
    np.testing.assert_allclose(np.asarray(Y3), np.asarray(Y_ref),
                               rtol=1e-1, atol=2e-2)
    np.testing.assert_allclose(np.asarray(A3), np.asarray(A_ref),
                               rtol=1e-1, atol=1e-3)

    print("KERNEL_OK")
</pallas_src>

<mosaic_0001>
module attributes {stable_mosaic.version = 11 : i64} {
  func.func @mil_bag_kernel(%arg0: i32, %arg1: i32, %arg2: memref<1xi32, #tpu.memory_space<smem>>, %arg3: memref<640x256xf32, #tpu.memory_space<vmem>>, %arg4: memref<256x64xf32, #tpu.memory_space<vmem>>, %arg5: memref<1x64xf32, #tpu.memory_space<vmem>>, %arg6: memref<4x64xf32, #tpu.memory_space<vmem>>, %arg7: memref<4x1xf32, #tpu.memory_space<vmem>>, %arg8: memref<4x640xf32, #tpu.memory_space<vmem>>, %arg9: memref<1x4x1xf32, #tpu.memory_space<vmem>>, %arg10: memref<1x4x1xf32, #tpu.memory_space<vmem>>, %arg11: memref<1x4x256xf32, #tpu.memory_space<vmem>>) attributes {dimension_semantics = [#tpu.dimension_semantics<parallel>, #tpu.dimension_semantics<arbitrary>], iteration_bounds = array<i64: 1, 1>, scalar_prefetch = 1 : i64, scratch_operands = 0 : i64, tpu.core_type = #tpu.core_type<tc>, window_params = [{transform_indices = @transform_0, window_bounds = array<i64: 640, 256>}, {pipeline_mode = #tpu.pipeline_mode<synchronous>, transform_indices = @transform_1, window_bounds = array<i64: 256, 64>}, {pipeline_mode = #tpu.pipeline_mode<synchronous>, transform_indices = @transform_2, window_bounds = array<i64: 1, 64>}, {pipeline_mode = #tpu.pipeline_mode<synchronous>, transform_indices = @transform_3, window_bounds = array<i64: 4, 64>}, {pipeline_mode = #tpu.pipeline_mode<synchronous>, transform_indices = @transform_4, window_bounds = array<i64: 4, 1>}, {transform_indices = @transform_5, window_bounds = array<i64: 4, 640>}, {transform_indices = @transform_6, window_bounds = array<i64: 1, 4, 1>}, {transform_indices = @transform_7, window_bounds = array<i64: 1, 4, 1>}, {transform_indices = @transform_8, window_bounds = array<i64: 1, 4, 256>}]} {
    %c0 = arith.constant 0 : index
    %0 = memref.load %arg2[%c0] : memref<1xi32, #tpu.memory_space<smem>>
    %c0_i32 = arith.constant 0 : i32
    %1 = arith.cmpi eq, %arg1, %c0_i32 : i32
    %2 = arith.extui %1 : i1 to i32
    %c0_i32_0 = arith.constant 0 : i32
    %3 = arith.cmpi ne, %2, %c0_i32_0 : i32
    scf.if %3 {
      %cst_37 = arith.constant -1.000000e+30 : f32
      %67 = vector.broadcast %cst_37 : f32 to vector<4x1xf32>
      %c0_38 = arith.constant 0 : index
      %c0_39 = arith.constant 0 : index
      %c0_40 = arith.constant 0 : index
      %68 = vector.load %arg9[%c0_38, %c0_39, %c0_40] : memref<1x4x1xf32, #tpu.memory_space<vmem>>, vector<1x4x1xf32>
      %69 = vector.shape_cast %68 : vector<1x4x1xf32> to vector<4x1xf32>
      %70 = vector.shape_cast %67 : vector<4x1xf32> to vector<1x4x1xf32>
      tpu.vector_store %arg9[%c0_38, %c0_39, %c0_40], %70 {strides = array<i32>} : memref<1x4x1xf32, #tpu.memory_space<vmem>>, vector<1x4x1xf32>,
      %cst_41 = arith.constant 0.000000e+00 : f32
      %71 = vector.broadcast %cst_41 : f32 to vector<4x1xf32>
      %c0_42 = arith.constant 0 : index
      %c0_43 = arith.constant 0 : index
      %c0_44 = arith.constant 0 : index
      %72 = vector.load %arg10[%c0_42, %c0_43, %c0_44] : memref<1x4x1xf32, #tpu.memory_space<vmem>>, vector<1x4x1xf32>
      %73 = vector.shape_cast %72 : vector<1x4x1xf32> to vector<4x1xf32>
      %74 = vector.shape_cast %71 : vector<4x1xf32> to vector<1x4x1xf32>
      tpu.vector_store %arg10[%c0_42, %c0_43, %c0_44], %74 {strides = array<i32>} : memref<1x4x1xf32, #tpu.memory_space<vmem>>, vector<1x4x1xf32>,
      %cst_45 = arith.constant 0.000000e+00 : f32
      %75 = vector.broadcast %cst_45 : f32 to vector<4x256xf32>
      %c0_46 = arith.constant 0 : index
      %c0_47 = arith.constant 0 : index
      %c0_48 = arith.constant 0 : index
      %76 = vector.load %arg11[%c0_46, %c0_47, %c0_48] : memref<1x4x256xf32, #tpu.memory_space<vmem>>, vector<1x4x256xf32>
      %77 = vector.shape_cast %76 : vector<1x4x256xf32> to vector<4x256xf32>
      %78 = vector.shape_cast %75 : vector<4x256xf32> to vector<1x4x256xf32>
      tpu.vector_store %arg11[%c0_46, %c0_47, %c0_48], %78 {strides = array<i32>} : memref<1x4x256xf32, #tpu.memory_space<vmem>>, vector<1x4x256xf32>,
    } else {
    }
    %c1_i32 = arith.constant 1 : i32
    %4 = arith.muli %arg0, %c1_i32 : i32
    %5 = arith.addi %4, %arg1 : i32
    %c640_i32 = arith.constant 640 : i32
    %6 = arith.muli %5, %c640_i32 : i32
    %c0_1 = arith.constant 0 : index
    %c0_2 = arith.constant 0 : index
    %7 = vector.load %arg3[%c0_1, %c0_2] : memref<640x256xf32, #tpu.memory_space<vmem>>, vector<640x256xf32>
    %8 = tpu.iota {dimensions = array<i32: 0>} : vector<640x1xi32>
    %9 = vector.broadcast %6 : i32 to vector<640x1xi32>
    %10 = arith.addi %9, %8 : vector<640x1xi32>
    %11 = vector.broadcast %0 : i32 to vector<640x1xi32>
    %12 = arith.cmpi slt, %10, %11 : vector<640x1xi32>
    %cst = arith.constant 0.000000e+00 : f32
    %13 = vector.shape_cast %12 : vector<640x1xi1> to vector<640x1xi1>
    %14 = vector.broadcast %13 : vector<640x1xi1> to vector<640x256xi1>
    %15 = vector.broadcast %cst : f32 to vector<640x256xf32>
    %16 = arith.select %14, %7, %15 : vector<640x256xi1>, vector<640x256xf32>
    %c0_3 = arith.constant 0 : index
    %c0_4 = arith.constant 0 : index
    %17 = vector.load %arg4[%c0_3, %c0_4] : memref<256x64xf32, #tpu.memory_space<vmem>>, vector<256x64xf32>
    %cst_5 = arith.constant dense<0.000000e+00> : vector<640x64xf32>
    %18 = tpu.matmul %16, %17, %cst_5 {dimension_numbers = #tpu.dot_dimension_numbers<[1], [0], [0], [1], [0, 0, 1, 1], [], []>} : vector<640x256xf32>, vector<256x64xf32>, vector<640x64xf32> -> vector<640x64xf32>
    %c0_6 = arith.constant 0 : index
    %c0_7 = arith.constant 0 : index
    %19 = vector.load %arg5[%c0_6, %c0_7] : memref<1x64xf32, #tpu.memory_space<vmem>>, vector<1x64xf32>
    %20 = vector.broadcast %19 : vector<1x64xf32> to vector<640x64xf32>
    %21 = arith.addf %18, %20 : vector<640x64xf32>
    %22 = math.tanh %21 : vector<640x64xf32>
    %c0_8 = arith.constant 0 : index
    %c0_9 = arith.constant 0 : index
    %23 = vector.load %arg6[%c0_8, %c0_9] : memref<4x64xf32, #tpu.memory_space<vmem>>, vector<4x64xf32>
    %cst_10 = arith.constant dense<0.000000e+00> : vector<4x640xf32>
    %24 = tpu.matmul %23, %22, %cst_10 {dimension_numbers = #tpu.dot_dimension_numbers<[1], [1], [0], [0], [0, 0, 1, 0], [], []>} : vector<4x64xf32>, vector<640x64xf32>, vector<4x640xf32> -> vector<4x640xf32>
    %c0_11 = arith.constant 0 : index
    %c0_12 = arith.constant 0 : index
    %25 = vector.load %arg7[%c0_11, %c0_12] : memref<4x1xf32, #tpu.memory_space<vmem>>, vector<4x1xf32>
    %26 = vector.broadcast %25 : vector<4x1xf32> to vector<4x640xf32>
    %27 = arith.addf %24, %26 : vector<4x640xf32>
    %c0_13 = arith.constant 0 : index
    %c0_14 = arith.constant 0 : index
    %28 = vector.load %arg8[%c0_13, %c0_14] : memref<4x640xf32, #tpu.memory_space<vmem>>, vector<4x640xf32>
    tpu.vector_store %arg8[%c0_13, %c0_14], %27 {strides = array<i32>} : memref<4x640xf32, #tpu.memory_space<vmem>>, vector<4x640xf32>,
    %29 = tpu.iota {dimensions = array<i32: 1>} : vector<4x640xi32>
    %30 = vector.broadcast %6 : i32 to vector<4x640xi32>
    %31 = arith.addi %30, %29 : vector<4x640xi32>
    %32 = vector.broadcast %0 : i32 to vector<4x640xi32>
    %33 = arith.cmpi slt, %31, %32 : vector<4x640xi32>
    %cst_15 = arith.constant -1.000000e+30 : f32
    %34 = vector.broadcast %cst_15 : f32 to vector<4x640xf32>
    %35 = arith.select %33, %27, %34 : vector<4x640xi1>, vector<4x640xf32>
    %c0_16 = arith.constant 0 : index
    %c0_17 = arith.constant 0 : index
    %c0_18 = arith.constant 0 : index
    %36 = vector.load %arg9[%c0_16, %c0_17, %c0_18] : memref<1x4x1xf32, #tpu.memory_space<vmem>>, vector<1x4x1xf32>
    %37 = vector.shape_cast %36 : vector<1x4x1xf32> to vector<4x1xf32>
    %cst_19 = arith.constant dense<0xFF800000> : vector<4xf32>
    %38 = vector.multi_reduction <maximumf>, %35, %cst_19 [1] : vector<4x640xf32> to vector<4xf32>
    %39 = vector.shape_cast %38 : vector<4xf32> to vector<4x1xf32>
    %40 = arith.maximumf %37, %39 : vector<4x1xf32>
    %41 = arith.subf %37, %40 : vector<4x1xf32>
    %42 = math.exp %41 : vector<4x1xf32>
    %43 = vector.broadcast %40 : vector<4x1xf32> to vector<4x640xf32>
    %44 = arith.subf %35, %43 : vector<4x640xf32>
    %45 = math.exp %44 : vector<4x640xf32>
    %c0_20 = arith.constant 0 : index
    %c0_21 = arith.constant 0 : index
    %c0_22 = arith.constant 0 : index
    %46 = vector.load %arg10[%c0_20, %c0_21, %c0_22] : memref<1x4x1xf32, #tpu.memory_space<vmem>>, vector<1x4x1xf32>
    %47 = vector.shape_cast %46 : vector<1x4x1xf32> to vector<4x1xf32>
    %48 = arith.mulf %42, %47 : vector<4x1xf32>
    %cst_23 = arith.constant dense<0.000000e+00> : vector<4xf32>
    %49 = vector.multi_reduction <add>, %45, %cst_23 [1] : vector<4x640xf32> to vector<4xf32>
    %50 = vector.shape_cast %49 : vector<4xf32> to vector<4x1xf32>
    %51 = arith.addf %48, %50 : vector<4x1xf32>
    %c0_24 = arith.constant 0 : index
    %c0_25 = arith.constant 0 : index
    %c0_26 = arith.constant 0 : index
    %52 = vector.load %arg10[%c0_24, %c0_25, %c0_26] : memref<1x4x1xf32, #tpu.memory_space<vmem>>, vector<1x4x1xf32>
    %53 = vector.shape_cast %52 : vector<1x4x1xf32> to vector<4x1xf32>
    %54 = vector.shape_cast %51 : vector<4x1xf32> to vector<1x4x1xf32>
    tpu.vector_store %arg10[%c0_24, %c0_25, %c0_26], %54 {strides = array<i32>} : memref<1x4x1xf32, #tpu.memory_space<vmem>>, vector<1x4x1xf32>,
    %c0_27 = arith.constant 0 : index
    %c0_28 = arith.constant 0 : index
    %c0_29 = arith.constant 0 : index
    %55 = vector.load %arg11[%c0_27, %c0_28, %c0_29] : memref<1x4x256xf32, #tpu.memory_space<vmem>>, vector<1x4x256xf32>
    %56 = vector.shape_cast %55 : vector<1x4x256xf32> to vector<4x256xf32>
    %57 = vector.broadcast %42 : vector<4x1xf32> to vector<4x256xf32>
    %58 = arith.mulf %57, %56 : vector<4x256xf32>
    %cst_30 = arith.constant dense<0.000000e+00> : vector<4x256xf32>
    %59 = tpu.matmul %45, %16, %cst_30 {dimension_numbers = #tpu.dot_dimension_numbers<[1], [0], [0], [1], [0, 0, 1, 1], [], []>} : vector<4x640xf32>, vector<640x256xf32>, vector<4x256xf32> -> vector<4x256xf32>
    %60 = arith.addf %58, %59 : vector<4x256xf32>
    %c0_31 = arith.constant 0 : index
    %c0_32 = arith.constant 0 : index
    %c0_33 = arith.constant 0 : index
    %61 = vector.load %arg11[%c0_31, %c0_32, %c0_33] : memref<1x4x256xf32, #tpu.memory_space<vmem>>, vector<1x4x256xf32>
    %62 = vector.shape_cast %61 : vector<1x4x256xf32> to vector<4x256xf32>
    %63 = vector.shape_cast %60 : vector<4x256xf32> to vector<1x4x256xf32>
    tpu.vector_store %arg11[%c0_31, %c0_32, %c0_33], %63 {strides = array<i32>} : memref<1x4x256xf32, #tpu.memory_space<vmem>>, vector<1x4x256xf32>,
    %c0_34 = arith.constant 0 : index
    %c0_35 = arith.constant 0 : index
    %c0_36 = arith.constant 0 : index
    %64 = vector.load %arg9[%c0_34, %c0_35, %c0_36] : memref<1x4x1xf32, #tpu.memory_space<vmem>>, vector<1x4x1xf32>
    %65 = vector.shape_cast %64 : vector<1x4x1xf32> to vector<4x1xf32>
    %66 = vector.shape_cast %40 : vector<4x1xf32> to vector<1x4x1xf32>
    tpu.vector_store %arg9[%c0_34, %c0_35, %c0_36], %66 {strides = array<i32>} : memref<1x4x1xf32, #tpu.memory_space<vmem>>, vector<1x4x1xf32>,
    return
  }
  func.func @transform_0(%arg0: i32, %arg1: i32, %arg2: memref<1xi32, #tpu.memory_space<smem>>) -> (i32, i32) {
    %c1_i32 = arith.constant 1 : i32
    %0 = arith.muli %arg0, %c1_i32 : i32
    %1 = arith.addi %0, %arg1 : i32
    %c0_i32 = arith.constant 0 : i32
    %2 = arith.minsi %1, %c0_i32 : i32
    %c0_i32_0 = arith.constant 0 : i32
    %c0_i32_1 = arith.constant 0 : i32
    return %2, %c0_i32_0 : i32, i32
  }
  func.func @transform_1(%arg0: i32, %arg1: i32, %arg2: memref<1xi32, #tpu.memory_space<smem>>) -> (i32, i32) {
    %c0_i32 = arith.constant 0 : i32
    %c0_i32_0 = arith.constant 0 : i32
    %c0_i32_1 = arith.constant 0 : i32
    return %c0_i32, %c0_i32_0 : i32, i32
  }
  func.func @transform_2(%arg0: i32, %arg1: i32, %arg2: memref<1xi32, #tpu.memory_space<smem>>) -> (i32, i32) {
    %c0_i32 = arith.constant 0 : i32
    %c0_i32_0 = arith.constant 0 : i32
    %c0_i32_1 = arith.constant 0 : i32
    return %c0_i32, %c0_i32_0 : i32, i32
  }
  func.func @transform_3(%arg0: i32, %arg1: i32, %arg2: memref<1xi32, #tpu.memory_space<smem>>) -> (i32, i32) {
    %c0_i32 = arith.constant 0 : i32
    %c0_i32_0 = arith.constant 0 : i32
    %c0_i32_1 = arith.constant 0 : i32
    return %c0_i32, %c0_i32_0 : i32, i32
  }
  func.func @transform_4(%arg0: i32, %arg1: i32, %arg2: memref<1xi32, #tpu.memory_space<smem>>) -> (i32, i32) {
    %c0_i32 = arith.constant 0 : i32
    %c0_i32_0 = arith.constant 0 : i32
    %c0_i32_1 = arith.constant 0 : i32
    return %c0_i32, %c0_i32_0 : i32, i32
  }
  func.func @transform_5(%arg0: i32, %arg1: i32, %arg2: memref<1xi32, #tpu.memory_space<smem>>) -> (i32, i32) {
    %c1_i32 = arith.constant 1 : i32
    %0 = arith.muli %arg0, %c1_i32 : i32
    %1 = arith.addi %0, %arg1 : i32
    %c0_i32 = arith.constant 0 : i32
    %c0_i32_0 = arith.constant 0 : i32
    return %c0_i32, %1 : i32, i32
  }
  func.func @transform_6(%arg0: i32, %arg1: i32, %arg2: memref<1xi32, #tpu.memory_space<smem>>) -> (i32, i32, i32) {
    %c0_i32 = arith.constant 0 : i32
    %c0_i32_0 = arith.constant 0 : i32
    %c0_i32_1 = arith.constant 0 : i32
    return %arg0, %c0_i32, %c0_i32_0 : i32, i32, i32
  }
  func.func @transform_7(%arg0: i32, %arg1: i32, %arg2: memref<1xi32, #tpu.memory_space<smem>>) -> (i32, i32, i32) {
    %c0_i32 = arith.constant 0 : i32
    %c0_i32_0 = arith.constant 0 : i32
    %c0_i32_1 = arith.constant 0 : i32
    return %arg0, %c0_i32, %c0_i32_0 : i32, i32, i32
  }
  func.func @transform_8(%arg0: i32, %arg1: i32, %arg2: memref<1xi32, #tpu.memory_space<smem>>) -> (i32, i32, i32) {
    %c0_i32 = arith.constant 0 : i32
    %c0_i32_0 = arith.constant 0 : i32
    %c0_i32_1 = arith.constant 0 : i32
    return %arg0, %c0_i32, %c0_i32_0 : i32, i32, i32
  }
}

</mosaic_0001>

<llo_original>
// kernel: tpu_custom_call.1
$region0: #{tpu_custom_call.1}
  #allocation0 [shape = 'u32[]', space=smem, size = 0x4, offset = 0x4, fixed_abs, tag = 'smem constant byte address 0x4 - core index']
  #allocation1 [shape = 'u32[144,128]{1,0:T(1,128)}', space=vmem, size = 0x12000, scoped, tag = 'internal scratch']
  #allocation2 [shape = 's32[1]{0}', space=sflag, size = 0x4, scoped, tag = 'scoped memory for tpu_custom_call.1']
  #allocation3 [shape = 's32[1]{0:T(128)S(6)}', space=smem, size = 0x200, scoped, tag = 'prefetched SMEM operand 0']
  %s0 = inlined_call_operand.<no memory space> [shape: s32[1], index: 0, kind: input, shape index: {}]
  %s1 = inlined_call_operand.hbm [shape: f32[600,256], index: 1, kind: input, shape index: {}]
  %s2 = inlined_call_operand.vmem [shape: f32[256,64], index: 2, kind: input, shape index: {}]
  %s3 = inlined_call_operand.vmem [shape: f32[1,64], index: 3, kind: input, shape index: {}]
  %s4 = inlined_call_operand.vmem [shape: f32[4,64], index: 4, kind: input, shape index: {}]
  %s5 = inlined_call_operand.vmem [shape: f32[4,1], index: 5, kind: input, shape index: {}]
  %s6 = inlined_call_operand.hbm [shape: f32[4,640], index: 6, kind: output, shape index: {0}]
  %s7 = inlined_call_operand.vmem [shape: f32[1,4,1], index: 7, kind: output, shape index: {1}]
  %s8 = inlined_call_operand.vmem [shape: f32[1,4,1], index: 8, kind: output, shape index: {2}]
  %s9 = inlined_call_operand.hbm [shape: f32[1,4,256], index: 9, kind: output, shape index: {3}]
  %10 = xla_tuple %s6, %s7, %s8, %s9
  %s11 = sld [smem:[#allocation0]]
  $region62: #{tpu_custom_call.1} parent=0
    _
  %s13 = ssub.s32 1, %s11
  %s14 = scalar_select 0, %s13, %s11
  %15 = sst [smem:[#allocation3]] %s0
  $region1: #{tpu_custom_call.1} parent=0
    #allocation4 [shape = 'u8[655360]{0}', space=vmem, size = 0xa0000, scoped, tag = 'input window, operand 1, single buffered']
    #allocation5 [shape = 's32[1]{0}', space=sflag, size = 0x4, scoped, tag = 'scoped memory for tpu_custom_call.1']
    #allocation6 [shape = 's32[1]{0}', space=sflag, size = 0x4, scoped, tag = 'scoped memory for tpu_custom_call.1']
    #allocation7 [shape = 'u8[10240]{0}', space=vmem, size = 0x2800, scoped, tag = 'output window, operand 0, single buffered']
    #allocation8 [shape = 'u8[4096]{0}', space=vmem, size = 0x1000, scoped, tag = 'output window, operand 3, single buffered']
    #allocation9 [shape = 's32[1]{0}', space=sflag, size = 0x4, scoped, tag = 'scoped memory for tpu_custom_call.1']
    %16 = vsyncpa [#allocation5], 0
    %17 = vsyncpa [#allocation6], 0
    %18 = vsyncpa [#allocation9], 0
    // Predicated region
    $region2: #{tpu_custom_call.1} parent=1 // pred_check
      _
    $region3: #{tpu_custom_call.1} parent=1 // pred_check_branch
      %20 = sbr.rel (0) target = $region5
    $region4: #{tpu_custom_call.1} parent=1 // pred_region
      %s21 = sadd.s32 0, 0
      %p22 = scmp.lt.s32.totalorder %s21, 0
      %s23 = scalar_select %p22, %s21, 0
      %s24 = smul.u32 80, %s23
      %s25 = ssub.s32 75, %s24
      %s26 = smul.u32 128, %s25
      %s27 = smul.u32 %s26, 2
      %s29 = ssub.s32 20480, %s27
      %30 = vsyncadd [#allocation5], %s29
      %p31 = scmp.ne.s32.totalorder 0, %s27
      %s32 = smul.addr %s24, 2
      %s33 = smul.addr %s32, 128
      %s34 = scalar_lea.hbm %s1, %s33
      %s35 = smul.u32 16, %s25
      %s36 = sshll.u32 [#allocation4], 4
      %s37 = int_to_ptr.vmem [resolvable:$true] %s36
      %s38 = sshll.u32 %s35, 4
      %42 = dma.hbm_to_vmem [thread:$0]  (%p31), %s34, %s38, %s37, [#allocation5], 256, 256, 16
    $region5: #{tpu_custom_call.1} parent=1 // pred_fallthru
      _
    // Predicated region
    $region6: #{tpu_custom_call.1} parent=1 // pred_check
      _
    $region7: #{tpu_custom_call.1} parent=1 // pred_check_branch
      %44 = sbr.rel (0) target = $region9
    $region8: #{tpu_custom_call.1} parent=1 // pred_region
      _
    $region9: #{tpu_custom_call.1} parent=1 // pred_fallthru
      _
    // Predicated region
    $region10: #{tpu_custom_call.1} parent=1 // pred_check
      _
    $region11: #{tpu_custom_call.1} parent=1 // pred_check_branch
      %46 = sbr.rel (0) target = $region13
    $region12: #{tpu_custom_call.1} parent=1 // pred_region
      _
    $region13: #{tpu_custom_call.1} parent=1 // pred_fallthru
      _
    // Predicated region
    $region14: #{tpu_custom_call.1} parent=1 // pred_check
      _
    $region15: #{tpu_custom_call.1} parent=1 // pred_check_branch
      %48 = sbr.rel (0) target = $region17
    $region16: #{tpu_custom_call.1} parent=1 // pred_region
      _
    $region17: #{tpu_custom_call.1} parent=1 // pred_fallthru
      _
    // Predicated region
    $region18: #{tpu_custom_call.1} parent=1 // pred_check
      _
    $region19: #{tpu_custom_call.1} parent=1 // pred_check_branch
      %50 = sbr.rel (0) target = $region21
    $region20: #{tpu_custom_call.1} parent=1 // pred_region
      _
    $region21: #{tpu_custom_call.1} parent=1 // pred_fallthru
      _
    // Predicated region
    $region22: #{tpu_custom_call.1} parent=1 // pred_check
      _
    $region23: #{tpu_custom_call.1} parent=1 // pred_check_branch
      %52 = sbr.rel (0) target = $region25
    $region24: #{tpu_custom_call.1} parent=1 // pred_region
      %53 = dma.done [#allocation5], 20480
    $region25: #{tpu_custom_call.1} parent=1 // pred_fallthru
      _
    %s54 = sadd.s32 0, 0
    %p55 = scmp.lt.s32.totalorder %s54, 0
    %s56 = scalar_select %p55, %s54, 0
    %s57 = smul.u32 80, %s56
    %s58 = ssub.s32 75, %s57
    %s59 = smul.u32 128, %s58
    %s60 = smul.u32 %s59, 2
    %s61 = sadd.s32 0, 0
    %s62 = smul.u32 5, %s61
    %s63 = sld [smem:[#allocation3]]
    %p64 = scmp.eq.s32.totalorder 0, 0
    // Predicated region
    $region26: #{tpu_custom_call.1} parent=1 // pred_check
      %p65 = pneg %p64
    $region27: #{tpu_custom_call.1} parent=1 // pred_check_branch
      %67 = sbr.rel (%p65) target = $region29
    $region28: #{tpu_custom_call.1} parent=1 // pred_region
      %vm68 = vcmask 3072
      %69 = vst.msk [vmem:[%s7] sm:$0xf] %vm68, -1e+30
      %70 = vst.msk [vmem:[%s8] sm:$0xf] %vm68, 0.0
      %71 = vst [vmem:[#allocation8] sm:$0xff] 0.0
    $region29: #{tpu_custom_call.1} parent=1 // pred_fallthru
      _
    %s72 = sadd.s32 0, 0
    %s73 = smul.u32 %s72, 640
    %v74 = vld [vmem:[#allocation4] sm:$0xff]
    %v75 = vld [vmem:[#allocation4 + $0x8] sm:$0xff]
    %v76 = vld [vmem:[#allocation4 + $0x10] sm:$0xff]
    %v77 = vld [vmem:[#allocation4 + $0x18] sm:$0xff]
    %v78 = vld [vmem:[#allocation4 + $0x20] sm:$0xff]
    %v79 = vld [vmem:[#allocation4 + $0x28] sm:$0xff]
    %v80 = vld [vmem:[#allocation4 + $0x30] sm:$0xff]
    %v81 = vld [vmem:[#allocation4 + $0x38] sm:$0xff]
    %v82 = vld [vmem:[#allocation4 + $0x40] sm:$0xff]
    %v83 = vld [vmem:[#allocation4 + $0x48] sm:$0xff]
    %v84 = vld [vmem:[#allocation4 + $0x50] sm:$0xff]
    %v85 = vld [vmem:[#allocation4 + $0x58] sm:$0xff]
    %v86 = vld [vmem:[#allocation4 + $0x60] sm:$0xff]
    %v87 = vld [vmem:[#allocation4 + $0x68] sm:$0xff]
    %v88 = vld [vmem:[#allocation4 + $0x70] sm:$0xff]
    %v89 = vld [vmem:[#allocation4 + $0x78] sm:$0xff]
    %v90 = vld [vmem:[#allocation4 + $0x80] sm:$0xff]
    %v91 = vld [vmem:[#allocation4 + $0x88] sm:$0xff]
    %v92 = vld [vmem:[#allocation4 + $0x90] sm:$0xff]
    %v93 = vld [vmem:[#allocation4 + $0x98] sm:$0xff]
    %v94 = vld [vmem:[#allocation4 + $0xa0] sm:$0xff]
    %v95 = vld [vmem:[#allocation4 + $0xa8] sm:$0xff]
    %v96 = vld [vmem:[#allocation4 + $0xb0] sm:$0xff]
    %v97 = vld [vmem:[#allocation4 + $0xb8] sm:$0xff]
    %v98 = vld [vmem:[#allocation4 + $0xc0] sm:$0xff]
    %v99 = vld [vmem:[#allocation4 + $0xc8] sm:$0xff]
    %v100 = vld [vmem:[#allocation4 + $0xd0] sm:$0xff]
    %v101 = vld [vmem:[#allocation4 + $0xd8] sm:$0xff]
    %v102 = vld [vmem:[#allocation4 + $0xe0] sm:$0xff]
    %v103 = vld [vmem:[#allocation4 + $0xe8] sm:$0xff]
    %v104 = vld [vmem:[#allocation4 + $0xf0] sm:$0xff]
    %v105 = vld [vmem:[#allocation4 + $0xf8] sm:$0xff]
    %v106 = vld [vmem:[#allocation4 + $0x100] sm:$0xff]
    %v107 = vld [vmem:[#allocation4 + $0x108] sm:$0xff]
    %v108 = vld [vmem:[#allocation4 + $0x110] sm:$0xff]
    %v109 = vld [vmem:[#allocation4 + $0x118] sm:$0xff]
    %v110 = vld [vmem:[#allocation4 + $0x120] sm:$0xff]
    %v111 = vld [vmem:[#allocation4 + $0x128] sm:$0xff]
    %v112 = vld [vmem:[#allocation4 + $0x130] sm:$0xff]
    %v113 = vld [vmem:[#allocation4 + $0x138] sm:$0xff]
    %v114 = vld [vmem:[#allocation4 + $0x140] sm:$0xff]
    %v115 = vld [vmem:[#allocation4 + $0x148] sm:$0xff]
    %v116 = vld [vmem:[#allocation4 + $0x150] sm:$0xff]
    %v117 = vld [vmem:[#allocation4 + $0x158] sm:$0xff]
    %v118 = vld [vmem:[#allocation4 + $0x160] sm:$0xff]
    %v119 = vld [vmem:[#allocation4 + $0x168] sm:$0xff]
    %v120 = vld [vmem:[#allocation4 + $0x170] sm:$0xff]
    %v121 = vld [vmem:[#allocation4 + $0x178] sm:$0xff]
    %v122 = vld [vmem:[#allocation4 + $0x180] sm:$0xff]
    %v123 = vld [vmem:[#allocation4 + $0x188] sm:$0xff]
    %v124 = vld [vmem:[#allocation4 + $0x190] sm:$0xff]
    %v125 = vld [vmem:[#allocation4 + $0x198] sm:$0xff]
    %v126 = vld [vmem:[#allocation4 + $0x1a0] sm:$0xff]
    %v127 = vld [vmem:[#allocation4 + $0x1a8] sm:$0xff]
    %v128 = vld [vmem:[#allocation4 + $0x1b0] sm:$0xff]
    %v129 = vld [vmem:[#allocation4 + $0x1b8] sm:$0xff]
    %v130 = vld [vmem:[#allocation4 + $0x1c0] sm:$0xff]
    %v131 = vld [vmem:[#allocation4 + $0x1c8] sm:$0xff]
    %v132 = vld [vmem:[#allocation4 + $0x1d0] sm:$0xff]
    %v133 = vld [vmem:[#allocation4 + $0x1d8] sm:$0xff]
    %v134 = vld [vmem:[#allocation4 + $0x1e0] sm:$0xff]
    %v135 = vld [vmem:[#allocation4 + $0x1e8] sm:$0xff]
    %v136 = vld [vmem:[#allocation4 + $0x1f0] sm:$0xff]
    %v137 = vld [vmem:[#allocation4 + $0x1f8] sm:$0xff]
    %v138 = vld [vmem:[#allocation4 + $0x200] sm:$0xff]
    %v139 = vld [vmem:[#allocation4 + $0x208] sm:$0xff]
    %v140 = vld [vmem:[#allocation4 + $0x210] sm:$0xff]
    %v141 = vld [vmem:[#allocation4 + $0x218] sm:$0xff]
    %v142 = vld [vmem:[#allocation4 + $0x220] sm:$0xff]
    %v143 = vld [vmem:[#allocation4 + $0x228] sm:$0xff]
    %v144 = vld [vmem:[#allocation4 + $0x230] sm:$0xff]
    %v145 = vld [vmem:[#allocation4 + $0x238] sm:$0xff]
    %v146 = vld [vmem:[#allocation4 + $0x240] sm:$0xff]
    %v147 = vld [vmem:[#allocation4 + $0x248] sm:$0xff]
    %v148 = vld [vmem:[#allocation4 + $0x250] sm:$0xff]
    %v149 = vld [vmem:[#allocation4 + $0x258] sm:$0xff]
    %v150 = vld [vmem:[#allocation4 + $0x260] sm:$0xff]
    %v151 = vld [vmem:[#allocation4 + $0x268] sm:$0xff]
    %v152 = vld [vmem:[#allocation4 + $0x270] sm:$0xff]
    %v153 = vld [vmem:[#allocation4 + $0x278] sm:$0xff]
    %v154 = vld [vmem:[#allocation4 + $0x280] sm:$0xff]
    %v155 = vld [vmem:[#allocation4 + $0x288] sm:$0xff]
    %v156 = vld [vmem:[#allocation4 + $0x290] sm:$0xff]
    %v157 = vld [vmem:[#allocation4 + $0x298] sm:$0xff]
    %v158 = vld [vmem:[#allocation4 + $0x2a0] sm:$0xff]
    %v159 = vld [vmem:[#allocation4 + $0x2a8] sm:$0xff]
    %v160 = vld [vmem:[#allocation4 + $0x2b0] sm:$0xff]
    %v161 = vld [vmem:[#allocation4 + $0x2b8] sm:$0xff]
    %v162 = vld [vmem:[#allocation4 + $0x2c0] sm:$0xff]
    %v163 = vld [vmem:[#allocation4 + $0x2c8] sm:$0xff]
    %v164 = vld [vmem:[#allocation4 + $0x2d0] sm:$0xff]
    %v165 = vld [vmem:[#allocation4 + $0x2d8] sm:$0xff]
    %v166 = vld [vmem:[#allocation4 + $0x2e0] sm:$0xff]
    %v167 = vld [vmem:[#allocation4 + $0x2e8] sm:$0xff]
    %v168 = vld [vmem:[#allocation4 + $0x2f0] sm:$0xff]
    %v169 = vld [vmem:[#allocation4 + $0x2f8] sm:$0xff]
    %v170 = vld [vmem:[#allocation4 + $0x300] sm:$0xff]
    %v171 = vld [vmem:[#allocation4 + $0x308] sm:$0xff]
    %v172 = vld [vmem:[#allocation4 + $0x310] sm:$0xff]
    %v173 = vld [vmem:[#allocation4 + $0x318] sm:$0xff]
    %v174 = vld [vmem:[#allocation4 + $0x320] sm:$0xff]
    %v175 = vld [vmem:[#allocation4 + $0x328] sm:$0xff]
    %v176 = vld [vmem:[#allocation4 + $0x330] sm:$0xff]
    %v177 = vld [vmem:[#allocation4 + $0x338] sm:$0xff]
    %v178 = vld [vmem:[#allocation4 + $0x340] sm:$0xff]
    %v179 = vld [vmem:[#allocation4 + $0x348] sm:$0xff]
    %v180 = vld [vmem:[#allocation4 + $0x350] sm:$0xff]
    %v181 = vld [vmem:[#allocation4 + $0x358] sm:$0xff]
    %v182 = vld [vmem:[#allocation4 + $0x360] sm:$0xff]
    %v183 = vld [vmem:[#allocation4 + $0x368] sm:$0xff]
    %v184 = vld [vmem:[#allocation4 + $0x370] sm:$0xff]
    %v185 = vld [vmem:[#allocation4 + $0x378] sm:$0xff]
    %v186 = vld [vmem:[#allocation4 + $0x380] sm:$0xff]
    %v187 = vld [vmem:[#allocation4 + $0x388] sm:$0xff]
    %v188 = vld [vmem:[#allocation4 + $0x390] sm:$0xff]
    %v189 = vld [vmem:[#allocation4 + $0x398] sm:$0xff]
    %v190 = vld [vmem:[#allocation4 + $0x3a0] sm:$0xff]
    %v191 = vld [vmem:[#allocation4 + $0x3a8] sm:$0xff]
    %v192 = vld [vmem:[#allocation4 + $0x3b0] sm:$0xff]
    %v193 = vld [vmem:[#allocation4 + $0x3b8] sm:$0xff]
    %v194 = vld [vmem:[#allocation4 + $0x3c0] sm:$0xff]
    %v195 = vld [vmem:[#allocation4 + $0x3c8] sm:$0xff]
    %v196 = vld [vmem:[#allocation4 + $0x3d0] sm:$0xff]
    %v197 = vld [vmem:[#allocation4 + $0x3d8] sm:$0xff]
    %v198 = vld [vmem:[#allocation4 + $0x3e0] sm:$0xff]
    %v199 = vld [vmem:[#allocation4 + $0x3e8] sm:$0xff]
    %v200 = vld [vmem:[#allocation4 + $0x3f0] sm:$0xff]
    %v201 = vld [vmem:[#allocation4 + $0x3f8] sm:$0xff]
    %v202 = vld [vmem:[#allocation4 + $0x400] sm:$0xff]
    %v203 = vld [vmem:[#allocation4 + $0x408] sm:$0xff]
    %v204 = vld [vmem:[#allocation4 + $0x410] sm:$0xff]
    %v205 = vld [vmem:[#allocation4 + $0x418] sm:$0xff]
    %v206 = vld [vmem:[#allocation4 + $0x420] sm:$0xff]
    %v207 = vld [vmem:[#allocation4 + $0x428] sm:$0xff]
    %v208 = vld [vmem:[#allocation4 + $0x430] sm:$0xff]
    %v209 = vld [vmem:[#allocation4 + $0x438] sm:$0xff]
    %v210 = vld [vmem:[#allocation4 + $0x440] sm:$0xff]
    %v211 = vld [vmem:[#allocation4 + $0x448] sm:$0xff]
    %v212 = vld [vmem:[#allocation4 + $0x450] sm:$0xff]
    %v213 = vld [vmem:[#allocation4 + $0x458] sm:$0xff]
    %v214 = vld [vmem:[#allocation4 + $0x460] sm:$0xff]
    %v215 = vld [vmem:[#allocation4 + $0x468] sm:$0xff]
    %v216 = vld [vmem:[#allocation4 + $0x470] sm:$0xff]
    %v217 = vld [vmem:[#allocation4 + $0x478] sm:$0xff]
    %v218 = vld [vmem:[#allocation4 + $0x480] sm:$0xff]
    %v219 = vld [vmem:[#allocation4 + $0x488] sm:$0xff]
    %v220 = vld [vmem:[#allocation4 + $0x490] sm:$0xff]
    %v221 = vld [vmem:[#allocation4 + $0x498] sm:$0xff]
    %v222 = vld [vmem:[#allocation4 + $0x4a0] sm:$0xff]
    %v223 = vld [vmem:[#allocation4 + $0x4a8] sm:$0xff]
    %v224 = vld [vmem:[#allocation4 + $0x4b0] sm:$0xff]
    %v225 = vld [vmem:[#allocation4 + $0x4b8] sm:$0xff]
    %v226 = vld [vmem:[#allocation4 + $0x4c0] sm:$0xff]
    %v227 = vld [vmem:[#allocation4 + $0x4c8] sm:$0xff]
    %v228 = vld [vmem:[#allocation4 + $0x4d0] sm:$0xff]
    %v229 = vld [vmem:[#allocation4 + $0x4d8] sm:$0xff]
    %v230 = vld [vmem:[#allocation4 + $0x4e0] sm:$0xff]
    %v231 = vld [vmem:[#allocation4 + $0x4e8] sm:$0xff]
    %v232 = vld [vmem:[#allocation4 + $0x4f0] sm:$0xff]
    %v233 = vld [vmem:[#allocation4 + $0x4f8] sm:$0xff]
    %v234 = vlaneseq
    %v235 = vshrl.u32 %v234, 7
    %v236 = vadd.s32 %v235, 8
    %v237 = vadd.s32 %v235, 16
    %v238 = vadd.s32 %v235, 24
    %v239 = vadd.s32 %v235, 32
    %v240 = vadd.s32 %v235, 40
    %v241 = vadd.s32 %v235, 48
    %v242 = vadd.s32 %v235, 56
    %v243 = vadd.s32 %v235, 64
    %v244 = vadd.s32 %v235, 72
    %v245 = vadd.s32 %v235, 80
    %v246 = vadd.s32 %v235, 88
    %v247 = vadd.s32 %v235, 96
    %v248 = vadd.s32 %v235, 104
    %v249 = vadd.s32 %v235, 112
    %v250 = vadd.s32 %v235, 120
    %v251 = vadd.s32 %v235, 128
    %v252 = vadd.s32 %v235, 136
    %v253 = vadd.s32 %v235, 144
    %v254 = vadd.s32 %v235, 152
    %v255 = vadd.s32 %v235, 160
    %v256 = vadd.s32 %v235, 168
    %v257 = vadd.s32 %v235, 176
    %v258 = vadd.s32 %v235, 184
    %v259 = vadd.s32 %v235, 192
    %v260 = vadd.s32 %v235, 200
    %v261 = vadd.s32 %v235, 208
    %v262 = vadd.s32 %v235, 216
    %v263 = vadd.s32 %v235, 224
    %v264 = vadd.s32 %v235, 232
    %v265 = vadd.s32 %v235, 240
    %v266 = vadd.s32 %v235, 248
    %v267 = vadd.s32 %v235, 256
    %v268 = vadd.s32 %v235, 264
    %v269 = vadd.s32 %v235, 272
    %v270 = vadd.s32 %v235, 280
    %v271 = vadd.s32 %v235, 288
    %v272 = vadd.s32 %v235, 296
    %v273 = vadd.s32 %v235, 304
    %v274 = vadd.s32 %v235, 312
    %v275 = vadd.s32 %v235, 320
    %v276 = vadd.s32 %v235, 328
    %v277 = vadd.s32 %v235, 336
    %v278 = vadd.s32 %v235, 344
    %v279 = vadd.s32 %v235, 352
    %v280 = vadd.s32 %v235, 360
    %v281 = vadd.s32 %v235, 368
    %v282 = vadd.s32 %v235, 376
    %v283 = vadd.s32 %v235, 384
    %v284 = vadd.s32 %v235, 392
    %v285 = vadd.s32 %v235, 400
    %v286 = vadd.s32 %v235, 408
    %v287 = vadd.s32 %v235, 416
    %v288 = vadd.s32 %v235, 424
    %v289 = vadd.s32 %v235, 432
    %v290 = vadd.s32 %v235, 440
    %v291 = vadd.s32 %v235, 448
    %v292 = vadd.s32 %v235, 456
    %v293 = vadd.s32 %v235, 464
    %v294 = vadd.s32 %v235, 472
    %v295 = vadd.s32 %v235, 480
    %v296 = vadd.s32 %v235, 488
    %v297 = vadd.s32 %v235, 496
    %v298 = vadd.s32 %v235, 504
    %v299 = vadd.s32 %v235, 512
    %v300 = vadd.s32 %v235, 520
    %v301 = vadd.s32 %v235, 528
    %v302 = vadd.s32 %v235, 536
    %v303 = vadd.s32 %v235, 544
    %v304 = vadd.s32 %v235, 552
    %v305 = vadd.s32 %v235, 560
    %v306 = vadd.s32 %v235, 568
    %v307 = vadd.s32 %v235, 576
    %v308 = vadd.s32 %v235, 584
    %v309 = vadd.s32 %v235, 592
    %v310 = vadd.s32 %v235, 600
    %v311 = vadd.s32 %v235, 608
    %v312 = vadd.s32 %v235, 616
    %v313 = vadd.s32 %v235, 624
    %v314 = vadd.s32 %v235, 632
    %v315 = vstv %s73
    %v316 = vadd.s32 %v315, %v235
    %v317 = vadd.s32 %v315, %v236
    %v318 = vadd.s32 %v315, %v237
    %v319 = vadd.s32 %v315, %v238
    %v320 = vadd.s32 %v315, %v239
    %v321 = vadd.s32 %v315, %v240
    %v322 = vadd.s32 %v315, %v241
    %v323 = vadd.s32 %v315, %v242
    %v324 = vadd.s32 %v315, %v243
    %v325 = vadd.s32 %v315, %v244
    %v326 = vadd.s32 %v315, %v245
    %v327 = vadd.s32 %v315, %v246
    %v328 = vadd.s32 %v315, %v247
    %v329 = vadd.s32 %v315, %v248
    %v330 = vadd.s32 %v315, %v249
    %v331 = vadd.s32 %v315, %v250
    %v332 = vadd.s32 %v315, %v251
    %v333 = vadd.s32 %v315, %v252
    %v334 = vadd.s32 %v315, %v253
    %v335 = vadd.s32 %v315, %v254
    %v336 = vadd.s32 %v315, %v255
    %v337 = vadd.s32 %v315, %v256
    %v338 = vadd.s32 %v315, %v257
    %v339 = vadd.s32 %v315, %v258
    %v340 = vadd.s32 %v315, %v259
    %v341 = vadd.s32 %v315, %v260
    %v342 = vadd.s32 %v315, %v261
    %v343 = vadd.s32 %v315, %v262
    %v344 = vadd.s32 %v315, %v263
    %v345 = vadd.s32 %v315, %v264
    %v346 = vadd.s32 %v315, %v265
    %v347 = vadd.s32 %v315, %v266
    %v348 = vadd.s32 %v315, %v267
    %v349 = vadd.s32 %v315, %v268
    %v350 = vadd.s32 %v315, %v269
    %v351 = vadd.s32 %v315, %v270
    %v352 = vadd.s32 %v315, %v271
    %v353 = vadd.s32 %v315, %v272
    %v354 = vadd.s32 %v315, %v273
    %v355 = vadd.s32 %v315, %v274
    %v356 = vadd.s32 %v315, %v275
    %v357 = vadd.s32 %v315, %v276
    %v358 = vadd.s32 %v315, %v277
    %v359 = vadd.s32 %v315, %v278
    %v360 = vadd.s32 %v315, %v279
    %v361 = vadd.s32 %v315, %v280
    %v362 = vadd.s32 %v315, %v281
    %v363 = vadd.s32 %v315, %v282
    %v364 = vadd.s32 %v315, %v283
    %v365 = vadd.s32 %v315, %v284
    %v366 = vadd.s32 %v315, %v285
    %v367 = vadd.s32 %v315, %v286
    %v368 = vadd.s32 %v315, %v287
    %v369 = vadd.s32 %v315, %v288
    %v370 = vadd.s32 %v315, %v289
    %v371 = vadd.s32 %v315, %v290
    %v372 = vadd.s32 %v315, %v291
    %v373 = vadd.s32 %v315, %v292
    %v374 = vadd.s32 %v315, %v293
    %v375 = vadd.s32 %v315, %v294
    %v376 = vadd.s32 %v315, %v295
    %v377 = vadd.s32 %v315, %v296
    %v378 = vadd.s32 %v315, %v297
    %v379 = vadd.s32 %v315, %v298
    %v380 = vadd.s32 %v315, %v299
    %v381 = vadd.s32 %v315, %v300
    %v382 = vadd.s32 %v315, %v301
    %v383 = vadd.s32 %v315, %v302
    %v384 = vadd.s32 %v315, %v303
    %v385 = vadd.s32 %v315, %v304
    %v386 = vadd.s32 %v315, %v305
    %v387 = vadd.s32 %v315, %v306
    %v388 = vadd.s32 %v315, %v307
    %v389 = vadd.s32 %v315, %v308
    %v390 = vadd.s32 %v315, %v309
    %v391 = vadd.s32 %v315, %v310
    %v392 = vadd.s32 %v315, %v311
    %v393 = vadd.s32 %v315, %v312
    %v394 = vadd.s32 %v315, %v313
    %v395 = vadd.s32 %v315, %v314
    %v396 = vstv %s63
    %vm397 = vcmp.lt.s32.totalorder %v316, %v396
    %vm398 = vcmp.lt.s32.totalorder %v317, %v396
    %vm399 = vcmp.lt.s32.totalorder %v318, %v396
    %vm400 = vcmp.lt.s32.totalorder %v319, %v396
    %vm401 = vcmp.lt.s32.totalorder %v320, %v396
    %vm402 = vcmp.lt.s32.totalorder %v321, %v396
    %vm403 = vcmp.lt.s32.totalorder %v322, %v396
    %vm404 = vcmp.lt.s32.totalorder %v323, %v396
    %vm405 = vcmp.lt.s32.totalorder %v324, %v396
    %vm406 = vcmp.lt.s32.totalorder %v325, %v396
    %vm407 = vcmp.lt.s32.totalorder %v326, %v396
    %vm408 = vcmp.lt.s32.totalorder %v327, %v396
    %vm409 = vcmp.lt.s32.totalorder %v328, %v396
    %vm410 = vcmp.lt.s32.totalorder %v329, %v396
    %vm411 = vcmp.lt.s32.totalorder %v330, %v396
    %vm412 = vcmp.lt.s32.totalorder %v331, %v396
    %vm413 = vcmp.lt.s32.totalorder %v332, %v396
    %vm414 = vcmp.lt.s32.totalorder %v333, %v396
    %vm415 = vcmp.lt.s32.totalorder %v334, %v396
    %vm416 = vcmp.lt.s32.totalorder %v335, %v396
    %vm417 = vcmp.lt.s32.totalorder %v336, %v396
    %vm418 = vcmp.lt.s32.totalorder %v337, %v396
    %vm419 = vcmp.lt.s32.totalorder %v338, %v396
    %vm420 = vcmp.lt.s32.totalorder %v339, %v396
    %vm421 = vcmp.lt.s32.totalorder %v340, %v396
    %vm422 = vcmp.lt.s32.totalorder %v341, %v396
    %vm423 = vcmp.lt.s32.totalorder %v342, %v396
    %vm424 = vcmp.lt.s32.totalorder %v343, %v396
    %vm425 = vcmp.lt.s32.totalorder %v344, %v396
    %vm426 = vcmp.lt.s32.totalorder %v345, %v396
    %vm427 = vcmp.lt.s32.totalorder %v346, %v396
    %vm428 = vcmp.lt.s32.totalorder %v347, %v396
    %vm429 = vcmp.lt.s32.totalorder %v348, %v396
    %vm430 = vcmp.lt.s32.totalorder %v349, %v396
    %vm431 = vcmp.lt.s32.totalorder %v350, %v396
    %vm432 = vcmp.lt.s32.totalorder %v351, %v396
    %vm433 = vcmp.lt.s32.totalorder %v352, %v396
    %vm434 = vcmp.lt.s32.totalorder %v353, %v396
    %vm435 = vcmp.lt.s32.totalorder %v354, %v396
    %vm436 = vcmp.lt.s32.totalorder %v355, %v396
    %vm437 = vcmp.lt.s32.totalorder %v356, %v396
    %vm438 = vcmp.lt.s32.totalorder %v357, %v396
    %vm439 = vcmp.lt.s32.totalorder %v358, %v396
    %vm440 = vcmp.lt.s32.totalorder %v359, %v396
    %vm441 = vcmp.lt.s32.totalorder %v360, %v396
    %vm442 = vcmp.lt.s32.totalorder %v361, %v396
    %vm443 = vcmp.lt.s32.totalorder %v362, %v396
    %vm444 = vcmp.lt.s32.totalorder %v363, %v396
    %vm445 = vcmp.lt.s32.totalorder %v364, %v396
    %vm446 = vcmp.lt.s32.totalorder %v365, %v396
    %vm447 = vcmp.lt.s32.totalorder %v366, %v396
    %vm448 = vcmp.lt.s32.totalorder %v367, %v396
    %vm449 = vcmp.lt.s32.totalorder %v368, %v396
    %vm450 = vcmp.lt.s32.totalorder %v369, %v396
    %vm451 = vcmp.lt.s32.totalorder %v370, %v396
    %vm452 = vcmp.lt.s32.totalorder %v371, %v396
    %vm453 = vcmp.lt.s32.totalorder %v372, %v396
    %vm454 = vcmp.lt.s32.totalorder %v373, %v396
    %vm455 = vcmp.lt.s32.totalorder %v374, %v396
    %vm456 = vcmp.lt.s32.totalorder %v375, %v396
    %vm457 = vcmp.lt.s32.totalorder %v376, %v396
    %vm458 = vcmp.lt.s32.totalorder %v377, %v396
    %vm459 = vcmp.lt.s32.totalorder %v378, %v396
    %vm460 = vcmp.lt.s32.totalorder %v379, %v396
    %vm461 = vcmp.lt.s32.totalorder %v380, %v396
    %vm462 = vcmp.lt.s32.totalorder %v381, %v396
    %vm463 = vcmp.lt.s32.totalorder %v382, %v396
    %vm464 = vcmp.lt.s32.totalorder %v383, %v396
    %vm465 = vcmp.lt.s32.totalorder %v384, %v396
    %vm466 = vcmp.lt.s32.totalorder %v385, %v396
    %vm467 = vcmp.lt.s32.totalorder %v386, %v396
    %vm468 = vcmp.lt.s32.totalorder %v387, %v396
    %vm469 = vcmp.lt.s32.totalorder %v388, %v396
    %vm470 = vcmp.lt.s32.totalorder %v389, %v396
    %vm471 = vcmp.lt.s32.totalorder %v390, %v396
    %vm472 = vcmp.lt.s32.totalorder %v391, %v396
    %vm473 = vcmp.lt.s32.totalorder %v392, %v396
    %vm474 = vcmp.lt.s32.totalorder %v393, %v396
    %vm475 = vcmp.lt.s32.totalorder %v394, %v396
    %vm476 = vcmp.lt.s32.totalorder %v395, %v396
    %v477 = vsel %vm397, 1, 0
    %v478 = vsel %vm398, 1, 0
    %v479 = vsel %vm399, 1, 0
    %v480 = vsel %vm400, 1, 0
    %v481 = vsel %vm401, 1, 0
    %v482 = vsel %vm402, 1, 0
    %v483 = vsel %vm403, 1, 0
    %v484 = vsel %vm404, 1, 0
    %v485 = vsel %vm405, 1, 0
    %v486 = vsel %vm406, 1, 0
    %v487 = vsel %vm407, 1, 0
    %v488 = vsel %vm408, 1, 0
    %v489 = vsel %vm409, 1, 0
    %v490 = vsel %vm410, 1, 0
    %v491 = vsel %vm411, 1, 0
    %v492 = vsel %vm412, 1, 0
    %v493 = vsel %vm413, 1, 0
    %v494 = vsel %vm414, 1, 0
    %v495 = vsel %vm415, 1, 0
    %v496 = vsel %vm416, 1, 0
    %v497 = vsel %vm417, 1, 0
    %v498 = vsel %vm418, 1, 0
    %v499 = vsel %vm419, 1, 0
    %v500 = vsel %vm420, 1, 0
    %v501 = vsel %vm421, 1, 0
    %v502 = vsel %vm422, 1, 0
    %v503 = vsel %vm423, 1, 0
    %v504 = vsel %vm424, 1, 0
    %v505 = vsel %vm425, 1, 0
    %v506 = vsel %vm426, 1, 0
    %v507 = vsel %vm427, 1, 0
    %v508 = vsel %vm428, 1, 0
    %v509 = vsel %vm429, 1, 0
    %v510 = vsel %vm430, 1, 0
    %v511 = vsel %vm431, 1, 0
    %v512 = vsel %vm432, 1, 0
    %v513 = vsel %vm433, 1, 0
    %v514 = vsel %vm434, 1, 0
    %v515 = vsel %vm435, 1, 0
    %v516 = vsel %vm436, 1, 0
    %v517 = vsel %vm437, 1, 0
    %v518 = vsel %vm438, 1, 0
    %v519 = vsel %vm439, 1, 0
    %v520 = vsel %vm440, 1, 0
    %v521 = vsel %vm441, 1, 0
    %v522 = vsel %vm442, 1, 0
    %v523 = vsel %vm443, 1, 0
    %v524 = vsel %vm444, 1, 0
    %v525 = vsel %vm445, 1, 0
    %v526 = vsel %vm446, 1, 0
    %v527 = vsel %vm447, 1, 0
    %v528 = vsel %vm448, 1, 0
    %v529 = vsel %vm449, 1, 0
    %v530 = vsel %vm450, 1, 0
    %v531 = vsel %vm451, 1, 0
    %v532 = vsel %vm452, 1, 0
    %v533 = vsel %vm453, 1, 0
    %v534 = vsel %vm454, 1, 0
    %v535 = vsel %vm455, 1, 0
    %v536 = vsel %vm456, 1, 0
    %v537 = vsel %vm457, 1, 0
    %v538 = vsel %vm458, 1, 0
    %v539 = vsel %vm459, 1, 0
    %v540 = vsel %vm460, 1, 0
    %v541 = vsel %vm461, 1, 0
    %v542 = vsel %vm462, 1, 0
    %v543 = vsel %vm463, 1, 0
    %v544 = vsel %vm464, 1, 0
    %v545 = vsel %vm465, 1, 0
    %v546 = vsel %vm466, 1, 0
    %v547 = vsel %vm467, 1, 0
    %v548 = vsel %vm468, 1, 0
    %v549 = vsel %vm469, 1, 0
    %v550 = vsel %vm470, 1, 0
    %v551 = vsel %vm471, 1, 0
    %v552 = vsel %vm472, 1, 0
    %v553 = vsel %vm473, 1, 0
    %v554 = vsel %vm474, 1, 0
    %v555 = vsel %vm475, 1, 0
    %v556 = vsel %vm476, 1, 0
    %vm557 = vcmp.eq.s32.totalorder %v477, 1
    %vm558 = vcmp.eq.s32.totalorder %v478, 1
    %vm559 = vcmp.eq.s32.totalorder %v479, 1
    %vm560 = vcmp.eq.s32.totalorder %v480, 1
    %vm561 = vcmp.eq.s32.totalorder %v481, 1
    %vm562 = vcmp.eq.s32.totalorder %v482, 1
    %vm563 = vcmp.eq.s32.totalorder %v483, 1
    %vm564 = vcmp.eq.s32.totalorder %v484, 1
    %vm565 = vcmp.eq.s32.totalorder %v485, 1
    %vm566 = vcmp.eq.s32.totalorder %v486, 1
    %vm567 = vcmp.eq.s32.totalorder %v487, 1
    %vm568 = vcmp.eq.s32.totalorder %v488, 1
    %vm569 = vcmp.eq.s32.totalorder %v489, 1
    %vm570 = vcmp.eq.s32.totalorder %v490, 1
    %vm571 = vcmp.eq.s32.totalorder %v491, 1
    %vm572 = vcmp.eq.s32.totalorder %v492, 1
    %vm573 = vcmp.eq.s32.totalorder %v493, 1
    %vm574 = vcmp.eq.s32.totalorder %v494, 1
    %vm575 = vcmp.eq.s32.totalorder %v495, 1
    %vm576 = vcmp.eq.s32.totalorder %v496, 1
    %vm577 = vcmp.eq.s32.totalorder %v497, 1
    %vm578 = vcmp.eq.s32.totalorder %v498, 1
    %vm579 = vcmp.eq.s32.totalorder %v499, 1
    %vm580 = vcmp.eq.s32.totalorder %v500, 1
    %vm581 = vcmp.eq.s32.totalorder %v501, 1
    %vm582 = vcmp.eq.s32.totalorder %v502, 1
    %vm583 = vcmp.eq.s32.totalorder %v503, 1
    %vm584 = vcmp.eq.s32.totalorder %v504, 1
    %vm585 = vcmp.eq.s32.totalorder %v505, 1
    %vm586 = vcmp.eq.s32.totalorder %v506, 1
    %vm587 = vcmp.eq.s32.totalorder %v507, 1
    %vm588 = vcmp.eq.s32.totalorder %v508, 1
    %vm589 = vcmp.eq.s32.totalorder %v509, 1
    %vm590 = vcmp.eq.s32.totalorder %v510, 1
    %vm591 = vcmp.eq.s32.totalorder %v511, 1
    %vm592 = vcmp.eq.s32.totalorder %v512, 1
    %vm593 = vcmp.eq.s32.totalorder %v513, 1
    %vm594 = vcmp.eq.s32.totalorder %v514, 1
    %vm595 = vcmp.eq.s32.totalorder %v515, 1
    %vm596 = vcmp.eq.s32.totalorder %v516, 1
    %vm597 = vcmp.eq.s32.totalorder %v517, 1
    %vm598 = vcmp.eq.s32.totalorder %v518, 1
    %vm599 = vcmp.eq.s32.totalorder %v519, 1
    %vm600 = vcmp.eq.s32.totalorder %v520, 1
    %vm601 = vcmp.eq.s32.totalorder %v521, 1
    %vm602 = vcmp.eq.s32.totalorder %v522, 1
    %vm603 = vcmp.eq.s32.totalorder %v523, 1
    %vm604 = vcmp.eq.s32.totalorder %v524, 1
    %vm605 = vcmp.eq.s32.totalorder %v525, 1
    %vm606 = vcmp.eq.s32.totalorder %v526, 1
    %vm607 = vcmp.eq.s32.totalorder %v527, 1
    %vm608 = vcmp.eq.s32.totalorder %v528, 1
    %vm609 = vcmp.eq.s32.totalorder %v529, 1
    %vm610 = vcmp.eq.s32.totalorder %v530, 1
    %vm611 = vcmp.eq.s32.totalorder %v531, 1
    %vm612 = vcmp.eq.s32.totalorder %v532, 1
    %vm613 = vcmp.eq.s32.totalorder %v533, 1
    %vm614 = vcmp.eq.s32.totalorder %v534, 1
    %vm615 = vcmp.eq.s32.totalorder %v535, 1
    %vm616 = vcmp.eq.s32.totalorder %v536, 1
    %vm617 = vcmp.eq.s32.totalorder %v537, 1
    %vm618 = vcmp.eq.s32.totalorder %v538, 1
    %vm619 = vcmp.eq.s32.totalorder %v539, 1
    %vm620 = vcmp.eq.s32.totalorder %v540, 1
    %vm621 = vcmp.eq.s32.totalorder %v541, 1
    %vm622 = vcmp.eq.s32.totalorder %v542, 1
    %vm623 = vcmp.eq.s32.totalorder %v543, 1
    %vm624 = vcmp.eq.s32.totalorder %v544, 1
    %vm625 = vcmp.eq.s32.totalorder %v545, 1
    %vm626 = vcmp.eq.s32.totalorder %v546, 1
    %vm627 = vcmp.eq.s32.totalorder %v547, 1
    %vm628 = vcmp.eq.s32.totalorder %v548, 1
    %vm629 = vcmp.eq.s32.totalorder %v549, 1
    %vm630 = vcmp.eq.s32.totalorder %v550, 1
    %vm631 = vcmp.eq.s32.totalorder %v551, 1
    %vm632 = vcmp.eq.s32.totalorder %v552, 1
    %vm633 = vcmp.eq.s32.totalorder %v553, 1
    %vm634 = vcmp.eq.s32.totalorder %v554, 1
    %vm635 = vcmp.eq.s32.totalorder %v555, 1
    %vm636 = vcmp.eq.s32.totalorder %v556, 1
    %v637 = vsel %vm557, %v74, 0.0
    %v638 = vsel %vm557, %v75, 0.0
    %v639 = vsel %vm558, %v76, 0.0
    %v640 = vsel %vm558, %v77, 0.0
    %v641 = vsel %vm559, %v78, 0.0
    %v642 = vsel %vm559, %v79, 0.0
    %v643 = vsel %vm560, %v80, 0.0
    %v644 = vsel %vm560, %v81, 0.0
    %v645 = vsel %vm561, %v82, 0.0
    %v646 = vsel %vm561, %v83, 0.0
    %v647 = vsel %vm562, %v84, 0.0
    %v648 = vsel %vm562, %v85, 0.0
    %v649 = vsel %vm563, %v86, 0.0
    %v650 = vsel %vm563, %v87, 0.0
    %v651 = vsel %vm564, %v88, 0.0
    %v652 = vsel %vm564, %v89, 0.0
    %v653 = vsel %vm565, %v90, 0.0
    %v654 = vsel %vm565, %v91, 0.0
    %v655 = vsel %vm566, %v92, 0.0
    %v656 = vsel %vm566, %v93, 0.0
    %v657 = vsel %vm567, %v94, 0.0
    %v658 = vsel %vm567, %v95, 0.0
    %v659 = vsel %vm568, %v96, 0.0
    %v660 = vsel %vm568, %v97, 0.0
    %v661 = vsel %vm569, %v98, 0.0
    %v662 = vsel %vm569, %v99, 0.0
    %v663 = vsel %vm570, %v100, 0.0
    %v664 = vsel %vm570, %v101, 0.0
    %v665 = vsel %vm571, %v102, 0.0
    %v666 = vsel %vm571, %v103, 0.0
    %v667 = vsel %vm572, %v104, 0.0
    %v668 = vsel %vm572, %v105, 0.0
    %v669 = vsel %vm573, %v106, 0.0
    %v670 = vsel %vm573, %v107, 0.0
    %v671 = vsel %vm574, %v108, 0.0
    %v672 = vsel %vm574, %v109, 0.0
    %v673 = vsel %vm575, %v110, 0.0
    %v674 = vsel %vm575, %v111, 0.0
    %v675 = vsel %vm576, %v112, 0.0
    %v676 = vsel %vm576, %v113, 0.0
    %v677 = vsel %vm577, %v114, 0.0
    %v678 = vsel %vm577, %v115, 0.0
    %v679 = vsel %vm578, %v116, 0.0
    %v680 = vsel %vm578, %v117, 0.0
    %v681 = vsel %vm579, %v118, 0.0
    %v682 = vsel %vm579, %v119, 0.0
    %v683 = vsel %vm580, %v120, 0.0
    %v684 = vsel %vm580, %v121, 0.0
    %v685 = vsel %vm581, %v122, 0.0
    %v686 = vsel %vm581, %v123, 0.0
    %v687 = vsel %vm582, %v124, 0.0
    %v688 = vsel %vm582, %v125, 0.0
    %v689 = vsel %vm583, %v126, 0.0
    %v690 = vsel %vm583, %v127, 0.0
    %v691 = vsel %vm584, %v128, 0.0
    %v692 = vsel %vm584, %v129, 0.0
    %v693 = vsel %vm585, %v130, 0.0
    %v694 = vsel %vm585, %v131, 0.0
    %v695 = vsel %vm586, %v132, 0.0
    %v696 = vsel %vm586, %v133, 0.0
    %v697 = vsel %vm587, %v134, 0.0
    %v698 = vsel %vm587, %v135, 0.0
    %v699 = vsel %vm588, %v136, 0.0
    %v700 = vsel %vm588, %v137, 0.0
    %v701 = vsel %vm589, %v138, 0.0
    %v702 = vsel %vm589, %v139, 0.0
    %v703 = vsel %vm590, %v140, 0.0
    %v704 = vsel %vm590, %v141, 0.0
    %v705 = vsel %vm591, %v142, 0.0
    %v706 = vsel %vm591, %v143, 0.0
    %v707 = vsel %vm592, %v144, 0.0
    %v708 = vsel %vm592, %v145, 0.0
    %v709 = vsel %vm593, %v146, 0.0
    %v710 = vsel %vm593, %v147, 0.0
    %v711 = vsel %vm594, %v148, 0.0
    %v712 = vsel %vm594, %v149, 0.0
    %v713 = vsel %vm595, %v150, 0.0
    %v714 = vsel %vm595, %v151, 0.0
    %v715 = vsel %vm596, %v152, 0.0
    %v716 = vsel %vm596, %v153, 0.0
    %v717 = vsel %vm597, %v154, 0.0
    %v718 = vsel %vm597, %v155, 0.0
    %v719 = vsel %vm598, %v156, 0.0
    %v720 = vsel %vm598, %v157, 0.0
    %v721 = vsel %vm599, %v158, 0.0
    %v722 = vsel %vm599, %v159, 0.0
    %v723 = vsel %vm600, %v160, 0.0
    %v724 = vsel %vm600, %v161, 0.0
    %v725 = vsel %vm601, %v162, 0.0
    %v726 = vsel %vm601, %v163, 0.0
    %v727 = vsel %vm602, %v164, 0.0
    %v728 = vsel %vm602, %v165, 0.0
    %v729 = vsel %vm603, %v166, 0.0
    %v730 = vsel %vm603, %v167, 0.0
    %v731 = vsel %vm604, %v168, 0.0
    %v732 = vsel %vm604, %v169, 0.0
    %v733 = vsel %vm605, %v170, 0.0
    %v734 = vsel %vm605, %v171, 0.0
    %v735 = vsel %vm606, %v172, 0.0
    %v736 = vsel %vm606, %v173, 0.0
    %v737 = vsel %vm607, %v174, 0.0
    %v738 = vsel %vm607, %v175, 0.0
    %v739 = vsel %vm608, %v176, 0.0
    %v740 = vsel %vm608, %v177, 0.0
    %v741 = vsel %vm609, %v178, 0.0
    %v742 = vsel %vm609, %v179, 0.0
    %v743 = vsel %vm610, %v180, 0.0
    %v744 = vsel %vm610, %v181, 0.0
    %v745 = vsel %vm611, %v182, 0.0
    %v746 = vsel %vm611, %v183, 0.0
    %v747 = vsel %vm612, %v184, 0.0
    %v748 = vsel %vm612, %v185, 0.0
    %v749 = vsel %vm613, %v186, 0.0
    %v750 = vsel %vm613, %v187, 0.0
    %v751 = vsel %vm614, %v188, 0.0
    %v752 = vsel %vm614, %v189, 0.0
    %v753 = vsel %vm615, %v190, 0.0
    %v754 = vsel %vm615, %v191, 0.0
    %v755 = vsel %vm616, %v192, 0.0
    %v756 = vsel %vm616, %v193, 0.0
    %v757 = vsel %vm617, %v194, 0.0
    %v758 = vsel %vm617, %v195, 0.0
    %v759 = vsel %vm618, %v196, 0.0
    %v760 = vsel %vm618, %v197, 0.0
    %v761 = vsel %vm619, %v198, 0.0
    %v762 = vsel %vm619, %v199, 0.0
    %v763 = vsel %vm620, %v200, 0.0
    %v764 = vsel %vm620, %v201, 0.0
    %v765 = vsel %vm621, %v202, 0.0
    %v766 = vsel %vm621, %v203, 0.0
    %v767 = vsel %vm622, %v204, 0.0
    %v768 = vsel %vm622, %v205, 0.0
    %v769 = vsel %vm623, %v206, 0.0
    %v770 = vsel %vm623, %v207, 0.0
    %v771 = vsel %vm624, %v208, 0.0
    %v772 = vsel %vm624, %v209, 0.0
    %v773 = vsel %vm625, %v210, 0.0
    %v774 = vsel %vm625, %v211, 0.0
    %v775 = vsel %vm626, %v212, 0.0
    %v776 = vsel %vm626, %v213, 0.0
    %v777 = vsel %vm627, %v214, 0.0
    %v778 = vsel %vm627, %v215, 0.0
    %v779 = vsel %vm628, %v216, 0.0
    %v780 = vsel %vm628, %v217, 0.0
    %v781 = vsel %vm629, %v218, 0.0
    %v782 = vsel %vm629, %v219, 0.0
    %v783 = vsel %vm630, %v220, 0.0
    %v784 = vsel %vm630, %v221, 0.0
    %v785 = vsel %vm631, %v222, 0.0
    %v786 = vsel %vm631, %v223, 0.0
    %v787 = vsel %vm632, %v224, 0.0
    %v788 = vsel %vm632, %v225, 0.0
    %v789 = vsel %vm633, %v226, 0.0
    %v790 = vsel %vm633, %v227, 0.0
    %v791 = vsel %vm634, %v228, 0.0
    %v792 = vsel %vm634, %v229, 0.0
    %v793 = vsel %vm635, %v230, 0.0
    %v794 = vsel %vm635, %v231, 0.0
    %v795 = vsel %vm636, %v232, 0.0
    %v796 = vsel %vm636, %v233, 0.0
    %v797 = vld [vmem:[%s2] sm:$0xff]
    %v798 = vld [vmem:[%s2 + $0x8] sm:$0xff]
    %v799 = vld [vmem:[%s2 + $0x10] sm:$0xff]
    %v800 = vld [vmem:[%s2 + $0x18] sm:$0xff]
    %v801 = vld [vmem:[%s2 + $0x20] sm:$0xff]
    %v802 = vld [vmem:[%s2 + $0x28] sm:$0xff]
    %v803 = vld [vmem:[%s2 + $0x30] sm:$0xff]
    %v804 = vld [vmem:[%s2 + $0x38] sm:$0xff]
    %v805 = vld [vmem:[%s2 + $0x40] sm:$0xff]
    %v806 = vld [vmem:[%s2 + $0x48] sm:$0xff]
    %v807 = vld [vmem:[%s2 + $0x50] sm:$0xff]
    %v808 = vld [vmem:[%s2 + $0x58] sm:$0xff]
    %v809 = vld [vmem:[%s2 + $0x60] sm:$0xff]
    %v810 = vld [vmem:[%s2 + $0x68] sm:$0xff]
    %v811 = vld [vmem:[%s2 + $0x70] sm:$0xff]
    %v812 = vld [vmem:[%s2 + $0x78] sm:$0xff]
    %v813 = vld [vmem:[%s2 + $0x80] sm:$0xff]
    %v814 = vld [vmem:[%s2 + $0x88] sm:$0xff]
    %v815 = vld [vmem:[%s2 + $0x90] sm:$0xff]
    %v816 = vld [vmem:[%s2 + $0x98] sm:$0xff]
    %v817 = vld [vmem:[%s2 + $0xa0] sm:$0xff]
    %v818 = vld [vmem:[%s2 + $0xa8] sm:$0xff]
    %v819 = vld [vmem:[%s2 + $0xb0] sm:$0xff]
    %v820 = vld [vmem:[%s2 + $0xb8] sm:$0xff]
    %v821 = vld [vmem:[%s2 + $0xc0] sm:$0xff]
    %v822 = vld [vmem:[%s2 + $0xc8] sm:$0xff]
    %v823 = vld [vmem:[%s2 + $0xd0] sm:$0xff]
    %v824 = vld [vmem:[%s2 + $0xd8] sm:$0xff]
    %v825 = vld [vmem:[%s2 + $0xe0] sm:$0xff]
    %v826 = vld [vmem:[%s2 + $0xe8] sm:$0xff]
    %v827 = vld [vmem:[%s2 + $0xf0] sm:$0xff]
    %v828 = vld [vmem:[%s2 + $0xf8] sm:$0xff]
    %v829 = vld [vmem:[%s3] sm:$0x1]
    %v831 = vlaneseq
    %v832 = vshrl.u32 %v831, 7
    %v833 = vsub.s32 0, %v832
    %v834 = vrot.slane %v829, %v833
    %836 = vmatprep.subr.mxu0 0.0
    %837 = vmatpush1.msra.mxu0 %v797
    %838 = vmatprep.subr.mxu0 0.0
    %839 = vmatpush1.msra.mxu0 %v798
    %840 = vmatprep.subr.mxu0 0.0
    %841 = vmatpush1.msra.mxu0 %v799
    %842 = vmatprep.subr.mxu0 0.0
    %843 = vmatpush1.msra.mxu0 %v800
    %844 = vmatprep.subr.mxu0 0.0
    %845 = vmatpush1.msra.mxu0 %v801
    %846 = vmatprep.subr.mxu0 0.0
    %847 = vmatpush1.msra.mxu0 %v802
    %848 = vmatprep.subr.mxu0 0.0
    %849 = vmatpush1.msra.mxu0 %v803
    %850 = vmatprep.subr.mxu0 0.0
    %851 = vmatpush1.msra.mxu0 %v804
    %852 = vmatprep.subr.mxu0 0.0
    %853 = vmatpush1.msra.mxu0 %v805
    %854 = vmatprep.subr.mxu0 0.0
    %855 = vmatpush1.msra.mxu0 %v806
    %856 = vmatprep.subr.mxu0 0.0
    %857 = vmatpush1.msra.mxu0 %v807
    %858 = vmatprep.subr.mxu0 0.0
    %859 = vmatpush1.msra.mxu0 %v808
    %860 = vmatprep.subr.mxu0 0.0
    %861 = vmatpush1.msra.mxu0 %v809
    %862 = vmatprep.subr.mxu0 0.0
    %863 = vmatpush1.msra.mxu0 %v810
    %864 = vmatprep.subr.mxu0 0.0
    %865 = vmatpush1.msra.mxu0 %v811
    %866 = vmatprep.subr.mxu0 0.0
    %867 = vmatpush1.msra.mxu0 %v812
    %868 = vmatprep.subr.mxu0 0.0
    %869 = vmatpush1.msra.mxu0 %v813
    %870 = vmatprep.subr.mxu0 0.0
    %871 = vmatpush1.msra.mxu0 %v814
    %872 = vmatprep.subr.mxu0 0.0
    %873 = vmatpush1.msra.mxu0 %v815
    %874 = vmatprep.subr.mxu0 0.0
    %875 = vmatpush1.msra.mxu0 %v816
    %876 = vmatprep.subr.mxu0 0.0
    %877 = vmatpush1.msra.mxu0 %v817
    %878 = vmatprep.subr.mxu0 0.0
    %879 = vmatpush1.msra.mxu0 %v818
    %880 = vmatprep.subr.mxu0 0.0
    %881 = vmatpush1.msra.mxu0 %v819
    %882 = vmatprep.subr.mxu0 0.0
    %883 = vmatpush1.msra.mxu0 %v820
    %884 = vmatprep.subr.mxu0 0.0
    %885 = vmatpush1.msra.mxu0 %v821
    %886 = vmatprep.subr.mxu0 0.0
    %887 = vmatpush1.msra.mxu0 %v822
    %888 = vmatprep.subr.mxu0 0.0
    %889 = vmatpush1.msra.mxu0 %v823
    %890 = vmatprep.subr.mxu0 0.0
    %891 = vmatpush1.msra.mxu0 %v824
    %892 = vmatprep.subr.mxu0 0.0
    %893 = vmatpush1.msra.mxu0 %v825
    %894 = vmatprep.subr.mxu0 0.0
    %895 = vmatpush1.msra.mxu0 %v826
    %896 = vmatprep.subr.mxu0 0.0
    %897 = vmatpush1.msra.mxu0 %v827
    %898 = vmatprep.subr.mxu0 0.0
    %899 = vmatpush1.msra.mxu0 %v828
    %900 = vmatprep.mubr.f32.mxu0 %v638
    %901 = vmatmul.mubr.f32.gmra.mrb[0].mxu0 %v637
    %v902 = vpop.f32.mrb[0].mxu0
    %v903 = vadd.f32 %v834, %v902
    %v904 = vpop.f32.mrb[0].mxu0
    %905 = vmatprep.mubr.f32.mxu0 %v640
    %906 = vmatmul.mubr.f32.gmra.mrb[0].mxu0 %v639
    %v907 = vpop.f32.mrb[0].mxu0
    %v908 = vadd.f32 %v834, %v907
    %v909 = vpop.f32.mrb[0].mxu0
    %910 = vmatprep.mubr.f32.mxu0 %v642
    %911 = vmatmul.mubr.f32.gmra.mrb[0].mxu0 %v641
    %v912 = vpop.f32.mrb[0].mxu0
    %v913 = vadd.f32 %v834, %v912
    %v914 = vpop.f32.mrb[0].mxu0
    %915 = vmatprep.mubr.f32.mxu0 %v644
    %916 = vmatmul.mubr.f32.gmra.mrb[0].mxu0 %v643
    %v917 = vpop.f32.mrb[0].mxu0
    %v918 = vadd.f32 %v834, %v917
    %v919 = vpop.f32.mrb[0].mxu0
    %920 = vmatprep.mubr.f32.mxu0 %v646
    %921 = vmatmul.mubr.f32.gmra.mrb[0].mxu0 %v645
    %v922 = vpop.f32.mrb[0].mxu0
    %v923 = vadd.f32 %v834, %v922
    %v924 = vpop.f32.mrb[0].mxu0
    %925 = vmatprep.mubr.f32.mxu0 %v648
    %926 = vmatmul.mubr.f32.gmra.mrb[0].mxu0 %v647
    %v927 = vpop.f32.mrb[0].mxu0
    %v928 = vadd.f32 %v834, %v927
    %v929 = vpop.f32.mrb[0].mxu0
    %930 = vmatprep.mubr.f32.mxu0 %v650
    %931 = vmatmul.mubr.f32.gmra.mrb[0].mxu0 %v649
    %v932 = vpop.f32.mrb[0].mxu0
    %v933 = vadd.f32 %v834, %v932
    %v934 = vpop.f32.mrb[0].mxu0
    %935 = vmatprep.mubr.f32.mxu0 %v652
    %936 = vmatmul.mubr.f32.gmra.mrb[0].mxu0 %v651
    %v937 = vpop.f32.mrb[0].mxu0
    %v938 = vadd.f32 %v834, %v937
    %v939 = vpop.f32.mrb[0].mxu0
    %940 = vmatprep.mubr.f32.mxu0 %v654
    %941 = vmatmul.mubr.f32.gmra.mrb[0].mxu0 %v653
    %v942 = vpop.f32.mrb[0].mxu0
    %v943 = vadd.f32 %v834, %v942
    %v944 = vpop.f32.mrb[0].mxu0
    %945 = vmatprep.mubr.f32.mxu0 %v656
    %946 = vmatmul.mubr.f32.gmra.mrb[0].mxu0 %v655
    %v947 = vpop.f32.mrb[0].mxu0
    %v948 = vadd.f32 %v834, %v947
    %v949 = vpop.f32.mrb[0].mxu0
    %950 = vmatprep.mubr.f32.mxu0 %v658
    %951 = vmatmul.mubr.f32.gmra.mrb[0].mxu0 %v657
    %v952 = vpop.f32.mrb[0].mxu0
    %v953 = vadd.f32 %v834, %v952
    %v954 = vpop.f32.mrb[0].mxu0
    %955 = vmatprep.mubr.f32.mxu0 %v660
    %956 = vmatmul.mubr.f32.gmra.mrb[0].mxu0 %v659
    %v957 = vpop.f32.mrb[0].mxu0
    %v958 = vadd.f32 %v834, %v957
    %v959 = vpop.f32.mrb[0].mxu0
    %960 = vmatprep.mubr.f32.mxu0 %v662
    %961 = vmatmul.mubr.f32.gmra.mrb[0].mxu0 %v661
    %v962 = vpop.f32.mrb[0].mxu0
    %v963 = vadd.f32 %v834, %v962
    %v964 = vpop.f32.mrb[0].mxu0
    %965 = vmatprep.mubr.f32.mxu0 %v664
    %966 = vmatmul.mubr.f32.gmra.mrb[0].mxu0 %v663
    %v967 = vpop.f32.mrb[0].mxu0
    %v968 = vadd.f32 %v834, %v967
    %v969 = vpop.f32.mrb[0].mxu0
    %970 = vmatprep.mubr.f32.mxu0 %v666
    %971 = vmatmul.mubr.f32.gmra.mrb[0].mxu0 %v665
    %v972 = vpop.f32.mrb[0].mxu0
    %v973 = vadd.f32 %v834, %v972
    %v974 = vpop.f32.mrb[0].mxu0
    %975 = vmatprep.mubr.f32.mxu0 %v668
    %976 = vmatmul.mubr.f32.gmra.mrb[0].mxu0 %v667
    %v977 = vpop.f32.mrb[0].mxu0
    %v978 = vadd.f32 %v834, %v977
    %v979 = vpop.f32.mrb[0].mxu0
    %980 = vmatprep.mubr.f32.mxu0 %v670
    %981 = vmatmul.mubr.f32.gmra.mrb[0].mxu0 %v669
    %v982 = vpop.f32.mrb[0].mxu0
    %v983 = vadd.f32 %v834, %v982
    %v984 = vpop.f32.mrb[0].mxu0
    %985 = vmatprep.mubr.f32.mxu0 %v672
    %986 = vmatmul.mubr.f32.gmra.mrb[0].mxu0 %v671
    %v987 = vpop.f32.mrb[0].mxu0
    %v988 = vadd.f32 %v834, %v987
    %v989 = vpop.f32.mrb[0].mxu0
    %990 = vmatprep.mubr.f32.mxu0 %v674
    %991 = vmatmul.mubr.f32.gmra.mrb[0].mxu0 %v673
    %v992 = vpop.f32.mrb[0].mxu0
    %v993 = vadd.f32 %v834, %v992
    %v994 = vpop.f32.mrb[0].mxu0
    %995 = vmatprep.mubr.f32.mxu0 %v676
    %996 = vmatmul.mubr.f32.gmra.mrb[0].mxu0 %v675
    %v997 = vpop.f32.mrb[0].mxu0
    %v998 = vadd.f32 %v834, %v997
    %v999 = vpop.f32.mrb[0].mxu0
    %1000 = vmatprep.mubr.f32.mxu0 %v678
    %1001 = vmatmul.mubr.f32.gmra.mrb[0].mxu0 %v677
    %v1002 = vpop.f32.mrb[0].mxu0
    %v1003 = vadd.f32 %v834, %v1002
    %v1004 = vpop.f32.mrb[0].mxu0
    %1005 = vmatprep.mubr.f32.mxu0 %v680
    %1006 = vmatmul.mubr.f32.gmra.mrb[0].mxu0 %v679
    %v1007 = vpop.f32.mrb[0].mxu0
    %v1008 = vadd.f32 %v834, %v1007
    %v1009 = vpop.f32.mrb[0].mxu0
    %1010 = vmatprep.mubr.f32.mxu0 %v682
    %1011 = vmatmul.mubr.f32.gmra.mrb[0].mxu0 %v681
    %v1012 = vpop.f32.mrb[0].mxu0
    %v1013 = vadd.f32 %v834, %v1012
    %v1014 = vpop.f32.mrb[0].mxu0
    %1015 = vmatprep.mubr.f32.mxu0 %v684
    %1016 = vmatmul.mubr.f32.gmra.mrb[0].mxu0 %v683
    %v1017 = vpop.f32.mrb[0].mxu0
    %v1018 = vadd.f32 %v834, %v1017
    %v1019 = vpop.f32.mrb[0].mxu0
    %1020 = vmatprep.mubr.f32.mxu0 %v686
    %1021 = vmatmul.mubr.f32.gmra.mrb[0].mxu0 %v685
    %v1022 = vpop.f32.mrb[0].mxu0
    %v1023 = vadd.f32 %v834, %v1022
    %v1024 = vpop.f32.mrb[0].mxu0
    %1025 = vmatprep.mubr.f32.mxu0 %v688
    %1026 = vmatmul.mubr.f32.gmra.mrb[0].mxu0 %v687
    %v1027 = vpop.f32.mrb[0].mxu0
    %v1028 = vadd.f32 %v834, %v1027
    %v1029 = vpop.f32.mrb[0].mxu0
    %1030 = vmatprep.mubr.f32.mxu0 %v690
    %1031 = vmatmul.mubr.f32.gmra.mrb[0].mxu0 %v689
    %v1032 = vpop.f32.mrb[0].mxu0
    %v1033 = vadd.f32 %v834, %v1032
    %v1034 = vpop.f32.mrb[0].mxu0
    %1035 = vmatprep.mubr.f32.mxu0 %v692
    %1036 = vmatmul.mubr.f32.gmra.mrb[0].mxu0 %v691
    %v1037 = vpop.f32.mrb[0].mxu0
    %v1038 = vadd.f32 %v834, %v1037
    %v1039 = vpop.f32.mrb[0].mxu0
    %1040 = vmatprep.mubr.f32.mxu0 %v694
    %1041 = vmatmul.mubr.f32.gmra.mrb[0].mxu0 %v693
    %v1042 = vpop.f32.mrb[0].mxu0
    %v1043 = vadd.f32 %v834, %v1042
    %v1044 = vpop.f32.mrb[0].mxu0
    %1045 = vmatprep.mubr.f32.mxu0 %v696
    %1046 = vmatmul.mubr.f32.gmra.mrb[0].mxu0 %v695
    %v1047 = vpop.f32.mrb[0].mxu0
    %v1048 = vadd.f32 %v834, %v1047
    %v1049 = vpop.f32.mrb[0].mxu0
    %1050 = vmatprep.mubr.f32.mxu0 %v698
    %1051 = vmatmul.mubr.f32.gmra.mrb[0].mxu0 %v697
    %v1052 = vpop.f32.mrb[0].mxu0
    %v1053 = vadd.f32 %v834, %v1052
    %v1054 = vpop.f32.mrb[0].mxu0
    %1055 = vmatprep.mubr.f32.mxu0 %v700
    %1056 = vmatmul.mubr.f32.gmra.mrb[0].mxu0 %v699
    %v1057 = vpop.f32.mrb[0].mxu0
    %v1058 = vadd.f32 %v834, %v1057
    %v1059 = vpop.f32.mrb[0].mxu0
    %1060 = vmatprep.mubr.f32.mxu0 %v702
    %1061 = vmatmul.mubr.f32.gmra.mrb[0].mxu0 %v701
    %v1062 = vpop.f32.mrb[0].mxu0
    %v1063 = vadd.f32 %v834, %v1062
    %v1064 = vpop.f32.mrb[0].mxu0
    %1065 = vmatprep.mubr.f32.mxu0 %v704
    %1066 = vmatmul.mubr.f32.gmra.mrb[0].mxu0 %v703
    %v1067 = vpop.f32.mrb[0].mxu0
    %v1068 = vadd.f32 %v834, %v1067
    %v1069 = vpop.f32.mrb[0].mxu0
    %1070 = vmatprep.mubr.f32.mxu0 %v706
    %1071 = vmatmul.mubr.f32.gmra.mrb[0].mxu0 %v705
    %v1072 = vpop.f32.mrb[0].mxu0
    %v1073 = vadd.f32 %v834, %v1072
    %v1074 = vpop.f32.mrb[0].mxu0
    %1075 = vmatprep.mubr.f32.mxu0 %v708
    %1076 = vmatmul.mubr.f32.gmra.mrb[0].mxu0 %v707
    %v1077 = vpop.f32.mrb[0].mxu0
    %v1078 = vadd.f32 %v834, %v1077
    %v1079 = vpop.f32.mrb[0].mxu0
    %1080 = vmatprep.mubr.f32.mxu0 %v710
    %1081 = vmatmul.mubr.f32.gmra.mrb[0].mxu0 %v709
    %v1082 = vpop.f32.mrb[0].mxu0
    %v1083 = vadd.f32 %v834, %v1082
    %v1084 = vpop.f32.mrb[0].mxu0
    %1085 = vmatprep.mubr.f32.mxu0 %v712
    %1086 = vmatmul.mubr.f32.gmra.mrb[0].mxu0 %v711
    %v1087 = vpop.f32.mrb[0].mxu0
    %v1088 = vadd.f32 %v834, %v1087
    %v1089 = vpop.f32.mrb[0].mxu0
    %1090 = vmatprep.mubr.f32.mxu0 %v714
    %1091 = vmatmul.mubr.f32.gmra.mrb[0].mxu0 %v713
    %v1092 = vpop.f32.mrb[0].mxu0
    %v1093 = vadd.f32 %v834, %v1092
    %v1094 = vpop.f32.mrb[0].mxu0
    %1095 = vmatprep.mubr.f32.mxu0 %v716
    %1096 = vmatmul.mubr.f32.gmra.mrb[0].mxu0 %v715
    %v1097 = vpop.f32.mrb[0].mxu0
    %v1098 = vadd.f32 %v834, %v1097
    %v1099 = vpop.f32.mrb[0].mxu0
    %1100 = vmatprep.mubr.f32.mxu0 %v718
    %1101 = vmatmul.mubr.f32.gmra.mrb[0].mxu0 %v717
    %v1102 = vpop.f32.mrb[0].mxu0
    %v1103 = vadd.f32 %v834, %v1102
    %v1104 = vpop.f32.mrb[0].mxu0
    %1105 = vmatprep.mubr.f32.mxu0 %v720
    %1106 = vmatmul.mubr.f32.gmra.mrb[0].mxu0 %v719
    %v1107 = vpop.f32.mrb[0].mxu0
    %v1108 = vadd.f32 %v834, %v1107
    %v1109 = vpop.f32.mrb[0].mxu0
    %1110 = vmatprep.mubr.f32.mxu0 %v722
    %1111 = vmatmul.mubr.f32.gmra.mrb[0].mxu0 %v721
    %v1112 = vpop.f32.mrb[0].mxu0
    %v1113 = vadd.f32 %v834, %v1112
    %v1114 = vpop.f32.mrb[0].mxu0
    %1115 = vmatprep.mubr.f32.mxu0 %v724
    %1116 = vmatmul.mubr.f32.gmra.mrb[0].mxu0 %v723
    %v1117 = vpop.f32.mrb[0].mxu0
    %v1118 = vadd.f32 %v834, %v1117
    %v1119 = vpop.f32.mrb[0].mxu0
    %1120 = vmatprep.mubr.f32.mxu0 %v726
    %1121 = vmatmul.mubr.f32.gmra.mrb[0].mxu0 %v725
    %v1122 = vpop.f32.mrb[0].mxu0
    %v1123 = vadd.f32 %v834, %v1122
    %v1124 = vpop.f32.mrb[0].mxu0
    %1125 = vmatprep.mubr.f32.mxu0 %v728
    %1126 = vmatmul.mubr.f32.gmra.mrb[0].mxu0 %v727
    %v1127 = vpop.f32.mrb[0].mxu0
    %v1128 = vadd.f32 %v834, %v1127
    %v1129 = vpop.f32.mrb[0].mxu0
    %1130 = vmatprep.mubr.f32.mxu0 %v730
    %1131 = vmatmul.mubr.f32.gmra.mrb[0].mxu0 %v729
    %v1132 = vpop.f32.mrb[0].mxu0
    %v1133 = vadd.f32 %v834, %v1132
    %v1134 = vpop.f32.mrb[0].mxu0
    %1135 = vmatprep.mubr.f32.mxu0 %v732
    %1136 = vmatmul.mubr.f32.gmra.mrb[0].mxu0 %v731
    %v1137 = vpop.f32.mrb[0].mxu0
    %v1138 = vadd.f32 %v834, %v1137
    %v1139 = vpop.f32.mrb[0].mxu0
    %1140 = vmatprep.mubr.f32.mxu0 %v734
    %1141 = vmatmul.mubr.f32.gmra.mrb[0].mxu0 %v733
    %v1142 = vpop.f32.mrb[0].mxu0
    %v1143 = vadd.f32 %v834, %v1142
    %v1144 = vpop.f32.mrb[0].mxu0
    %1145 = vmatprep.mubr.f32.mxu0 %v736
    %1146 = vmatmul.mubr.f32.gmra.mrb[0].mxu0 %v735
    %v1147 = vpop.f32.mrb[0].mxu0
    %v1148 = vadd.f32 %v834, %v1147
    %v1149 = vpop.f32.mrb[0].mxu0
    %1150 = vmatprep.mubr.f32.mxu0 %v738
    %1151 = vmatmul.mubr.f32.gmra.mrb[0].mxu0 %v737
    %v1152 = vpop.f32.mrb[0].mxu0
    %v1153 = vadd.f32 %v834, %v1152
    %v1154 = vpop.f32.mrb[0].mxu0
    %1155 = vmatprep.mubr.f32.mxu0 %v740
    %1156 = vmatmul.mubr.f32.gmra.mrb[0].mxu0 %v739
    %v1157 = vpop.f32.mrb[0].mxu0
    %v1158 = vadd.f32 %v834, %v1157
    %v1159 = vpop.f32.mrb[0].mxu0
    %1160 = vmatprep.mubr.f32.mxu0 %v742
    %1161 = vmatmul.mubr.f32.gmra.mrb[0].mxu0 %v741
    %v1162 = vpop.f32.mrb[0].mxu0
    %v1163 = vadd.f32 %v834, %v1162
    %v1164 = vpop.f32.mrb[0].mxu0
    %1165 = vmatprep.mubr.f32.mxu0 %v744
    %1166 = vmatmul.mubr.f32.gmra.mrb[0].mxu0 %v743
    %v1167 = vpop.f32.mrb[0].mxu0
    %v1168 = vadd.f32 %v834, %v1167
    %v1169 = vpop.f32.mrb[0].mxu0
    %1170 = vmatprep.mubr.f32.mxu0 %v746
    %1171 = vmatmul.mubr.f32.gmra.mrb[0].mxu0 %v745
    %v1172 = vpop.f32.mrb[0].mxu0
    %v1173 = vadd.f32 %v834, %v1172
    %v1174 = vpop.f32.mrb[0].mxu0
    %1175 = vmatprep.mubr.f32.mxu0 %v748
    %1176 = vmatmul.mubr.f32.gmra.mrb[0].mxu0 %v747
    %v1177 = vpop.f32.mrb[0].mxu0
    %v1178 = vadd.f32 %v834, %v1177
    %v1179 = vpop.f32.mrb[0].mxu0
    %1180 = vmatprep.mubr.f32.mxu0 %v750
    %1181 = vmatmul.mubr.f32.gmra.mrb[0].mxu0 %v749
    %v1182 = vpop.f32.mrb[0].mxu0
    %v1183 = vadd.f32 %v834, %v1182
    %v1184 = vpop.f32.mrb[0].mxu0
    %1185 = vmatprep.mubr.f32.mxu0 %v752
    %1186 = vmatmul.mubr.f32.gmra.mrb[0].mxu0 %v751
    %v1187 = vpop.f32.mrb[0].mxu0
    %v1188 = vadd.f32 %v834, %v1187
    %v1189 = vpop.f32.mrb[0].mxu0
    %1190 = vmatprep.mubr.f32.mxu0 %v754
    %1191 = vmatmul.mubr.f32.gmra.mrb[0].mxu0 %v753
    %v1192 = vpop.f32.mrb[0].mxu0
    %v1193 = vadd.f32 %v834, %v1192
    %v1194 = vpop.f32.mrb[0].mxu0
    %1195 = vmatprep.mubr.f32.mxu0 %v756
    %1196 = vmatmul.mubr.f32.gmra.mrb[0].mxu0 %v755
    %v1197 = vpop.f32.mrb[0].mxu0
    %v1198 = vadd.f32 %v834, %v1197
    %v1199 = vpop.f32.mrb[0].mxu0
    %1200 = vmatprep.mubr.f32.mxu0 %v758
    %1201 = vmatmul.mubr.f32.gmra.mrb[0].mxu0 %v757
    %v1202 = vpop.f32.mrb[0].mxu0
    %v1203 = vadd.f32 %v834, %v1202
    %v1204 = vpop.f32.mrb[0].mxu0
    %1205 = vmatprep.mubr.f32.mxu0 %v760
    %1206 = vmatmul.mubr.f32.gmra.mrb[0].mxu0 %v759
    %v1207 = vpop.f32.mrb[0].mxu0
    %v1208 = vadd.f32 %v834, %v1207
    %v1209 = vpop.f32.mrb[0].mxu0
    %1210 = vmatprep.mubr.f32.mxu0 %v762
    %1211 = vmatmul.mubr.f32.gmra.mrb[0].mxu0 %v761
    %v1212 = vpop.f32.mrb[0].mxu0
    %v1213 = vadd.f32 %v834, %v1212
    %v1214 = vpop.f32.mrb[0].mxu0
    %1215 = vmatprep.mubr.f32.mxu0 %v764
    %1216 = vmatmul.mubr.f32.gmra.mrb[0].mxu0 %v763
    %v1217 = vpop.f32.mrb[0].mxu0
    %v1218 = vadd.f32 %v834, %v1217
    %v1219 = vpop.f32.mrb[0].mxu0
    %1220 = vmatprep.mubr.f32.mxu0 %v766
    %1221 = vmatmul.mubr.f32.gmra.mrb[0].mxu0 %v765
    %v1222 = vpop.f32.mrb[0].mxu0
    %v1223 = vadd.f32 %v834, %v1222
    %v1224 = vpop.f32.mrb[0].mxu0
    %1225 = vmatprep.mubr.f32.mxu0 %v768
    %1226 = vmatmul.mubr.f32.gmra.mrb[0].mxu0 %v767
    %v1227 = vpop.f32.mrb[0].mxu0
    %v1228 = vadd.f32 %v834, %v1227
    %v1229 = vpop.f32.mrb[0].mxu0
    %1230 = vmatprep.mubr.f32.mxu0 %v770
    %1231 = vmatmul.mubr.f32.gmra.mrb[0].mxu0 %v769
    %v1232 = vpop.f32.mrb[0].mxu0
    %v1233 = vadd.f32 %v834, %v1232
    %v1234 = vpop.f32.mrb[0].mxu0
    %1235 = vmatprep.mubr.f32.mxu0 %v772
    %1236 = vmatmul.mubr.f32.gmra.mrb[0].mxu0 %v771
    %v1237 = vpop.f32.mrb[0].mxu0
    %v1238 = vadd.f32 %v834, %v1237
    %v1239 = vpop.f32.mrb[0].mxu0
    %1240 = vmatprep.mubr.f32.mxu0 %v774
    %1241 = vmatmul.mubr.f32.gmra.mrb[0].mxu0 %v773
    %v1242 = vpop.f32.mrb[0].mxu0
    %v1243 = vadd.f32 %v834, %v1242
    %v1244 = vpop.f32.mrb[0].mxu0
    %1245 = vmatprep.mubr.f32.mxu0 %v776
    %1246 = vmatmul.mubr.f32.gmra.mrb[0].mxu0 %v775
    %v1247 = vpop.f32.mrb[0].mxu0
    %v1248 = vadd.f32 %v834, %v1247
    %v1249 = vpop.f32.mrb[0].mxu0
    %1250 = vmatprep.mubr.f32.mxu0 %v778
    %1251 = vmatmul.mubr.f32.gmra.mrb[0].mxu0 %v777
    %v1252 = vpop.f32.mrb[0].mxu0
    %v1253 = vadd.f32 %v834, %v1252
    %v1254 = vpop.f32.mrb[0].mxu0
    %1255 = vmatprep.mubr.f32.mxu0 %v780
    %1256 = vmatmul.mubr.f32.gmra.mrb[0].mxu0 %v779
    %v1257 = vpop.f32.mrb[0].mxu0
    %v1258 = vadd.f32 %v834, %v1257
    %v1259 = vpop.f32.mrb[0].mxu0
    %1260 = vmatprep.mubr.f32.mxu0 %v782
    %1261 = vmatmul.mubr.f32.gmra.mrb[0].mxu0 %v781
    %v1262 = vpop.f32.mrb[0].mxu0
    %v1263 = vadd.f32 %v834, %v1262
    %v1264 = vpop.f32.mrb[0].mxu0
    %1265 = vmatprep.mubr.f32.mxu0 %v784
    %1266 = vmatmul.mubr.f32.gmra.mrb[0].mxu0 %v783
    %v1267 = vpop.f32.mrb[0].mxu0
    %v1268 = vadd.f32 %v834, %v1267
    %v1269 = vpop.f32.mrb[0].mxu0
    %1270 = vmatprep.mubr.f32.mxu0 %v786
    %1271 = vmatmul.mubr.f32.gmra.mrb[0].mxu0 %v785
    %v1272 = vpop.f32.mrb[0].mxu0
    %v1273 = vadd.f32 %v834, %v1272
    %v1274 = vpop.f32.mrb[0].mxu0
    %1275 = vmatprep.mubr.f32.mxu0 %v788
    %1276 = vmatmul.mubr.f32.gmra.mrb[0].mxu0 %v787
    %v1277 = vpop.f32.mrb[0].mxu0
    %v1278 = vadd.f32 %v834, %v1277
    %v1279 = vpop.f32.mrb[0].mxu0
    %1280 = vmatprep.mubr.f32.mxu0 %v790
    %1281 = vmatmul.mubr.f32.gmra.mrb[0].mxu0 %v789
    %v1282 = vpop.f32.mrb[0].mxu0
    %v1283 = vadd.f32 %v834, %v1282
    %v1284 = vpop.f32.mrb[0].mxu0
    %1285 = vmatprep.mubr.f32.mxu0 %v792
    %1286 = vmatmul.mubr.f32.gmra.mrb[0].mxu0 %v791
    %v1287 = vpop.f32.mrb[0].mxu0
    %v1288 = vadd.f32 %v834, %v1287
    %v1289 = vpop.f32.mrb[0].mxu0
    %1290 = vmatprep.mubr.f32.mxu0 %v794
    %1291 = vmatmul.mubr.f32.gmra.mrb[0].mxu0 %v793
    %v1292 = vpop.f32.mrb[0].mxu0
    %v1293 = vadd.f32 %v834, %v1292
    %v1294 = vpop.f32.mrb[0].mxu0
    %1295 = vmatprep.mubr.f32.mxu0 %v796
    %1296 = vmatmul.mubr.f32.gmra.mrb[0].mxu0 %v795
    %v1297 = vpop.f32.mrb[0].mxu0
    %v1298 = vadd.f32 %v834, %v1297
    %v1299 = vpop.f32.mrb[0].mxu0
    %1300 = vdwg.mxu0
    %v1301 = vtanh.pop %v903
    %v1302 = vtanh.pop %v908
    %v1303 = vtanh.pop %v913
    %v1304 = vtanh.pop %v918
    %v1305 = vtanh.pop %v923
    %v1306 = vtanh.pop %v928
    %v1307 = vtanh.pop %v933
    %v1308 = vtanh.pop %v938
    %v1309 = vtanh.pop %v943
    %v1310 = vtanh.pop %v948
    %v1311 = vtanh.pop %v953
    %v1312 = vtanh.pop %v958
    %v1313 = vtanh.pop %v963
    %v1314 = vtanh.pop %v968
    %v1315 = vtanh.pop %v973
    %v1316 = vtanh.pop %v978
    %v1317 = vtanh.pop %v983
    %v1318 = vtanh.pop %v988
    %v1319 = vtanh.pop %v993
    %v1320 = vtanh.pop %v998
    %v1321 = vtanh.pop %v1003
    %v1322 = vtanh.pop %v1008
    %v1323 = vtanh.pop %v1013
    %v1324 = vtanh.pop %v1018
    %v1325 = vtanh.pop %v1023
    %v1326 = vtanh.pop %v1028
    %v1327 = vtanh.pop %v1033
    %v1328 = vtanh.pop %v1038
    %v1329 = vtanh.pop %v1043
    %v1330 = vtanh.pop %v1048
    %v1331 = vtanh.pop %v1053
    %v1332 = vtanh.pop %v1058
    %v1333 = vtanh.pop %v1063
    %v1334 = vtanh.pop %v1068
    %v1335 = vtanh.pop %v1073
    %v1336 = vtanh.pop %v1078
    %v1337 = vtanh.pop %v1083
    %v1338 = vtanh.pop %v1088
    %v1339 = vtanh.pop %v1093
    %v1340 = vtanh.pop %v1098
    %v1341 = vtanh.pop %v1103
    %v1342 = vtanh.pop %v1108
    %v1343 = vtanh.pop %v1113
    %v1344 = vtanh.pop %v1118
    %v1345 = vtanh.pop %v1123
    %v1346 = vtanh.pop %v1128
    %v1347 = vtanh.pop %v1133
    %v1348 = vtanh.pop %v1138
    %v1349 = vtanh.pop %v1143
    %v1350 = vtanh.pop %v1148
    %v1351 = vtanh.pop %v1153
    %v1352 = vtanh.pop %v1158
    %v1353 = vtanh.pop %v1163
    %v1354 = vtanh.pop %v1168
    %v1355 = vtanh.pop %v1173
    %v1356 = vtanh.pop %v1178
    %v1357 = vtanh.pop %v1183
    %v1358 = vtanh.pop %v1188
    %v1359 = vtanh.pop %v1193
    %v1360 = vtanh.pop %v1198
    %v1361 = vtanh.pop %v1203
    %v1362 = vtanh.pop %v1208
    %v1363 = vtanh.pop %v1213
    %v1364 = vtanh.pop %v1218
    %v1365 = vtanh.pop %v1223
    %v1366 = vtanh.pop %v1228
    %v1367 = vtanh.pop %v1233
    %v1368 = vtanh.pop %v1238
    %v1369 = vtanh.pop %v1243
    %v1370 = vtanh.pop %v1248
    %v1371 = vtanh.pop %v1253
    %v1372 = vtanh.pop %v1258
    %v1373 = vtanh.pop %v1263
    %v1374 = vtanh.pop %v1268
    %v1375 = vtanh.pop %v1273
    %v1376 = vtanh.pop %v1278
    %v1377 = vtanh.pop %v1283
    %v1378 = vtanh.pop %v1288
    %v1379 = vtanh.pop %v1293
    %v1380 = vtanh.pop %v1298
    %v1381 = vld [vmem:[%s4] sm:$0xf]
    %v1382 = vld [vmem:[%s5] sm:$0xf]
    %1384 = vset.pattern.permute.xlu0 0
    %1385 = vperm.xlu0 %1384, %v1382
    %v1386 = vpop.permute.xlu0 %1385
    %vm1388 = vcmask 523264
    %v1390 = vsel %vm1388, %v1381, 0
    %v1393 = vsel %vm1388, %v1301, 0
    %v1396 = vsel %vm1388, %v1302, 0
    %v1399 = vsel %vm1388, %v1303, 0
    %v1402 = vsel %vm1388, %v1304, 0
    %v1405 = vsel %vm1388, %v1305, 0
    %v1408 = vsel %vm1388, %v1306, 0
    %v1411 = vsel %vm1388, %v1307, 0
    %v1414 = vsel %vm1388, %v1308, 0
    %v1417 = vsel %vm1388, %v1309, 0
    %v1420 = vsel %vm1388, %v1310, 0
    %v1423 = vsel %vm1388, %v1311, 0
    %v1426 = vsel %vm1388, %v1312, 0
    %v1429 = vsel %vm1388, %v1313, 0
    %v1432 = vsel %vm1388, %v1314, 0
    %v1435 = vsel %vm1388, %v1315, 0
    %v1438 = vsel %vm1388, %v1316, 0
    %v1441 = vsel %vm1388, %v1317, 0
    %v1444 = vsel %vm1388, %v1318, 0
    %v1447 = vsel %vm1388, %v1319, 0
    %v1450 = vsel %vm1388, %v1320, 0
    %v1453 = vsel %vm1388, %v1321, 0
    %v1456 = vsel %vm1388, %v1322, 0
    %v1459 = vsel %vm1388, %v1323, 0
    %v1462 = vsel %vm1388, %v1324, 0
    %v1465 = vsel %vm1388, %v1325, 0
    %v1468 = vsel %vm1388, %v1326, 0
    %v1471 = vsel %vm1388, %v1327, 0
    %v1474 = vsel %vm1388, %v1328, 0
    %v1477 = vsel %vm1388, %v1329, 0
    %v1480 = vsel %vm1388, %v1330, 0
    %v1483 = vsel %vm1388, %v1331, 0
    %v1486 = vsel %vm1388, %v1332, 0
    %v1489 = vsel %vm1388, %v1333, 0
    %v1492 = vsel %vm1388, %v1334, 0
    %v1495 = vsel %vm1388, %v1335, 0
    %v1498 = vsel %vm1388, %v1336, 0
    %v1501 = vsel %vm1388, %v1337, 0
    %v1504 = vsel %vm1388, %v1338, 0
    %v1507 = vsel %vm1388, %v1339, 0
    %v1510 = vsel %vm1388, %v1340, 0
    %v1513 = vsel %vm1388, %v1341, 0
    %v1516 = vsel %vm1388, %v1342, 0
    %v1519 = vsel %vm1388, %v1343, 0
    %v1522 = vsel %vm1388, %v1344, 0
    %v1525 = vsel %vm1388, %v1345, 0
    %v1528 = vsel %vm1388, %v1346, 0
    %v1531 = vsel %vm1388, %v1347, 0
    %v1534 = vsel %vm1388, %v1348, 0
    %v1537 = vsel %vm1388, %v1349, 0
    %v1540 = vsel %vm1388, %v1350, 0
    %v1543 = vsel %vm1388, %v1351, 0
    %v1546 = vsel %vm1388, %v1352, 0
    %v1549 = vsel %vm1388, %v1353, 0
    %v1552 = vsel %vm1388, %v1354, 0
    %v1555 = vsel %vm1388, %v1355, 0
    %v1558 = vsel %vm1388, %v1356, 0
    %v1561 = vsel %vm1388, %v1357, 0
    %v1564 = vsel %vm1388, %v1358, 0
    %v1567 = vsel %vm1388, %v1359, 0
    %v1570 = vsel %vm1388, %v1360, 0
    %v1573 = vsel %vm1388, %v1361, 0
    %v1576 = vsel %vm1388, %v1362, 0
    %v1579 = vsel %vm1388, %v1363, 0
    %v1582 = vsel %vm1388, %v1364, 0
    %v1585 = vsel %vm1388, %v1365, 0
    %v1588 = vsel %vm1388, %v1366, 0
    %v1591 = vsel %vm1388, %v1367, 0
    %v1594 = vsel %vm1388, %v1368, 0
    %v1597 = vsel %vm1388, %v1369, 0
    %v1600 = vsel %vm1388, %v1370, 0
    %v1603 = vsel %vm1388, %v1371, 0
    %v1606 = vsel %vm1388, %v1372, 0
    %v1609 = vsel %vm1388, %v1373, 0
    %v1612 = vsel %vm1388, %v1374, 0
    %v1615 = vsel %vm1388, %v1375, 0
    %v1618 = vsel %vm1388, %v1376, 0
    %v1621 = vsel %vm1388, %v1377, 0
    %v1624 = vsel %vm1388, %v1378, 0
    %v1627 = vsel %vm1388, %v1379, 0
    %v1630 = vsel %vm1388, %v1380, 0
    %1632 = vmatprep.subr.mxu0 0.0
    %1633 = vmatpush1.xpose.msra.mxu0 %v1393
    %1634 = vmatprep.subr.mxu0 0.0
    %1635 = vmatpush1.xpose.msra.mxu0 %v1396
    %1636 = vmatprep.subr.mxu0 0.0
    %1637 = vmatpush1.xpose.msra.mxu0 %v1399
    %1638 = vmatprep.subr.mxu0 0.0
    %1639 = vmatpush1.xpose.msra.mxu0 %v1402
    %1640 = vmatprep.subr.mxu0 0.0
    %1641 = vmatpush1.xpose.msra.mxu0 %v1405
    %1642 = vmatprep.subr.mxu0 0.0
    %1643 = vmatpush1.xpose.msra.mxu0 %v1408
    %1644 = vmatprep.subr.mxu0 0.0
    %1645 = vmatpush1.xpose.msra.mxu0 %v1411
    %1646 = vmatprep.subr.mxu0 0.0
    %1647 = vmatpush1.xpose.msra.mxu0 %v1414
    %1648 = vmatprep.subr.mxu0 0.0
    %1649 = vmatpush1.xpose.msra.mxu0 %v1417
    %1650 = vmatprep.subr.mxu0 0.0
    %1651 = vmatpush1.xpose.msra.mxu0 %v1420
    %1652 = vmatprep.subr.mxu0 0.0
    %1653 = vmatpush1.xpose.msra.mxu0 %v1423
    %1654 = vmatprep.subr.mxu0 0.0
    %1655 = vmatpush1.xpose.msra.mxu0 %v1426
    %1656 = vmatprep.subr.mxu0 0.0
    %1657 = vmatpush1.xpose.msra.mxu0 %v1429
    %1658 = vmatprep.subr.mxu0 0.0
    %1659 = vmatpush1.xpose.msra.mxu0 %v1432
    %1660 = vmatprep.subr.mxu0 0.0
    %1661 = vmatpush1.xpose.msra.mxu0 %v1435
    %1662 = vmatprep.subr.mxu0 0.0
    %1663 = vmatpush1.xpose.msra.mxu0 %v1438
    %1664 = vmatprep.subr.mxu0 0.0
    %1665 = vmatpush1.xpose.msra.mxu0 %v1441
    %1666 = vmatprep.subr.mxu0 0.0
    %1667 = vmatpush1.xpose.msra.mxu0 %v1444
    %1668 = vmatprep.subr.mxu0 0.0
    %1669 = vmatpush1.xpose.msra.mxu0 %v1447
    %1670 = vmatprep.subr.mxu0 0.0
    %1671 = vmatpush1.xpose.msra.mxu0 %v1450
    %1672 = vmatprep.subr.mxu0 0.0
    %1673 = vmatpush1.xpose.msra.mxu0 %v1453
    %1674 = vmatprep.subr.mxu0 0.0
    %1675 = vmatpush1.xpose.msra.mxu0 %v1456
    %1676 = vmatprep.subr.mxu0 0.0
    %1677 = vmatpush1.xpose.msra.mxu0 %v1459
    %1678 = vmatprep.subr.mxu0 0.0
    %1679 = vmatpush1.xpose.msra.mxu0 %v1462
    %1680 = vmatprep.subr.mxu0 0.0
    %1681 = vmatpush1.xpose.msra.mxu0 %v1465
    %1682 = vmatprep.subr.mxu0 0.0
    %1683 = vmatpush1.xpose.msra.mxu0 %v1468
    %1684 = vmatprep.subr.mxu0 0.0
    %1685 = vmatpush1.xpose.msra.mxu0 %v1471
    %1686 = vmatprep.subr.mxu0 0.0
    %1687 = vmatpush1.xpose.msra.mxu0 %v1474
    %1688 = vmatprep.subr.mxu0 0.0
    %1689 = vmatpush1.xpose.msra.mxu0 %v1477
    %1690 = vmatprep.subr.mxu0 0.0
    %1691 = vmatpush1.xpose.msra.mxu0 %v1480
    %1692 = vmatprep.subr.mxu0 0.0
    %1693 = vmatpush1.xpose.msra.mxu0 %v1483
    %1694 = vmatprep.subr.mxu0 0.0
    %1695 = vmatpush1.xpose.msra.mxu0 %v1486
    %1696 = vmatprep.mubr.f32.mxu0 0.0
    %1697 = vmatmul.mubr.f32.gmra.mrb[0].mxu0 %v1390
    %v1698 = vpop.f32.mrb[0].mxu0
    %v1699 = vadd.f32 %v1386, %v1698
    %v1700 = vpop.f32.mrb[0].mxu0
    %v1701 = vadd.f32 %v1386, %v1700
    %1702 = vdwg.mxu0
    %1703 = vmatprep.subr.mxu0 0.0
    %1704 = vmatpush1.xpose.msra.mxu0 %v1489
    %1705 = vmatprep.subr.mxu0 0.0
    %1706 = vmatpush1.xpose.msra.mxu0 %v1492
    %1707 = vmatprep.subr.mxu0 0.0
    %1708 = vmatpush1.xpose.msra.mxu0 %v1495
    %1709 = vmatprep.subr.mxu0 0.0
    %1710 = vmatpush1.xpose.msra.mxu0 %v1498
    %1711 = vmatprep.subr.mxu0 0.0
    %1712 = vmatpush1.xpose.msra.mxu0 %v1501
    %1713 = vmatprep.subr.mxu0 0.0
    %1714 = vmatpush1.xpose.msra.mxu0 %v1504
    %1715 = vmatprep.subr.mxu0 0.0
    %1716 = vmatpush1.xpose.msra.mxu0 %v1507
    %1717 = vmatprep.subr.mxu0 0.0
    %1718 = vmatpush1.xpose.msra.mxu0 %v1510
    %1719 = vmatprep.subr.mxu0 0.0
    %1720 = vmatpush1.xpose.msra.mxu0 %v1513
    %1721 = vmatprep.subr.mxu0 0.0
    %1722 = vmatpush1.xpose.msra.mxu0 %v1516
    %1723 = vmatprep.subr.mxu0 0.0
    %1724 = vmatpush1.xpose.msra.mxu0 %v1519
    %1725 = vmatprep.subr.mxu0 0.0
    %1726 = vmatpush1.xpose.msra.mxu0 %v1522
    %1727 = vmatprep.subr.mxu0 0.0
    %1728 = vmatpush1.xpose.msra.mxu0 %v1525
    %1729 = vmatprep.subr.mxu0 0.0
    %1730 = vmatpush1.xpose.msra.mxu0 %v1528
    %1731 = vmatprep.subr.mxu0 0.0
    %1732 = vmatpush1.xpose.msra.mxu0 %v1531
    %1733 = vmatprep.subr.mxu0 0.0
    %1734 = vmatpush1.xpose.msra.mxu0 %v1534
    %1735 = vmatprep.subr.mxu0 0.0
    %1736 = vmatpush1.xpose.msra.mxu0 %v1537
    %1737 = vmatprep.subr.mxu0 0.0
    %1738 = vmatpush1.xpose.msra.mxu0 %v1540
    %1739 = vmatprep.subr.mxu0 0.0
    %1740 = vmatpush1.xpose.msra.mxu0 %v1543
    %1741 = vmatprep.subr.mxu0 0.0
    %1742 = vmatpush1.xpose.msra.mxu0 %v1546
    %1743 = vmatprep.subr.mxu0 0.0
    %1744 = vmatpush1.xpose.msra.mxu0 %v1549
    %1745 = vmatprep.subr.mxu0 0.0
    %1746 = vmatpush1.xpose.msra.mxu0 %v1552
    %1747 = vmatprep.subr.mxu0 0.0
    %1748 = vmatpush1.xpose.msra.mxu0 %v1555
    %1749 = vmatprep.subr.mxu0 0.0
    %1750 = vmatpush1.xpose.msra.mxu0 %v1558
    %1751 = vmatprep.subr.mxu0 0.0
    %1752 = vmatpush1.xpose.msra.mxu0 %v1561
    %1753 = vmatprep.subr.mxu0 0.0
    %1754 = vmatpush1.xpose.msra.mxu0 %v1564
    %1755 = vmatprep.subr.mxu0 0.0
    %1756 = vmatpush1.xpose.msra.mxu0 %v1567
    %1757 = vmatprep.subr.mxu0 0.0
    %1758 = vmatpush1.xpose.msra.mxu0 %v1570
    %1759 = vmatprep.subr.mxu0 0.0
    %1760 = vmatpush1.xpose.msra.mxu0 %v1573
    %1761 = vmatprep.subr.mxu0 0.0
    %1762 = vmatpush1.xpose.msra.mxu0 %v1576
    %1763 = vmatprep.subr.mxu0 0.0
    %1764 = vmatpush1.xpose.msra.mxu0 %v1579
    %1765 = vmatprep.subr.mxu0 0.0
    %1766 = vmatpush1.xpose.msra.mxu0 %v1582
    %1767 = vmatprep.mubr.f32.mxu0 0.0
    %1768 = vmatmul.mubr.f32.gmra.mrb[0].mxu0 %v1390
    %v1769 = vpop.f32.mrb[0].mxu0
    %v1770 = vadd.f32 %v1386, %v1769
    %v1771 = vpop.f32.mrb[0].mxu0
    %v1772 = vadd.f32 %v1386, %v1771
    %1773 = vdwg.mxu0
    %1774 = vmatprep.subr.mxu0 0.0
    %1775 = vmatpush1.xpose.msra.mxu0 %v1585
    %1776 = vmatprep.subr.mxu0 0.0
    %1777 = vmatpush1.xpose.msra.mxu0 %v1588
    %1778 = vmatprep.subr.mxu0 0.0
    %1779 = vmatpush1.xpose.msra.mxu0 %v1591
    %1780 = vmatprep.subr.mxu0 0.0
    %1781 = vmatpush1.xpose.msra.mxu0 %v1594
    %1782 = vmatprep.subr.mxu0 0.0
    %1783 = vmatpush1.xpose.msra.mxu0 %v1597
    %1784 = vmatprep.subr.mxu0 0.0
    %1785 = vmatpush1.xpose.msra.mxu0 %v1600
    %1786 = vmatprep.subr.mxu0 0.0
    %1787 = vmatpush1.xpose.msra.mxu0 %v1603
    %1788 = vmatprep.subr.mxu0 0.0
    %1789 = vmatpush1.xpose.msra.mxu0 %v1606
    %1790 = vmatprep.subr.mxu0 0.0
    %1791 = vmatpush1.xpose.msra.mxu0 %v1609
    %1792 = vmatprep.subr.mxu0 0.0
    %1793 = vmatpush1.xpose.msra.mxu0 %v1612
    %1794 = vmatprep.subr.mxu0 0.0
    %1795 = vmatpush1.xpose.msra.mxu0 %v1615
    %1796 = vmatprep.subr.mxu0 0.0
    %1797 = vmatpush1.xpose.msra.mxu0 %v1618
    %1798 = vmatprep.subr.mxu0 0.0
    %1799 = vmatpush1.xpose.msra.mxu0 %v1621
    %1800 = vmatprep.subr.mxu0 0.0
    %1801 = vmatpush1.xpose.msra.mxu0 %v1624
    %1802 = vmatprep.subr.mxu0 0.0
    %1803 = vmatpush1.xpose.msra.mxu0 %v1627
    %1804 = vmatprep.subr.mxu0 0.0
    %1805 = vmatpush1.xpose.msra.mxu0 %v1630
    %1806 = vmatprep.subr.mxu0 0.0
    %1807 = vmatpush1.xpose.msra.mxu0 0.0
    %1808 = vmatprep.subr.mxu0 0.0
    %1809 = vmatpush1.xpose.msra.mxu0 0.0
    %1810 = vmatprep.subr.mxu0 0.0
    %1811 = vmatpush1.xpose.msra.mxu0 0.0
    %1812 = vmatprep.subr.mxu0 0.0
    %1813 = vmatpush1.xpose.msra.mxu0 0.0
    %1814 = vmatprep.subr.mxu0 0.0
    %1815 = vmatpush1.xpose.msra.mxu0 0.0
    %1816 = vmatprep.subr.mxu0 0.0
    %1817 = vmatpush1.xpose.msra.mxu0 0.0
    %1818 = vmatprep.subr.mxu0 0.0
    %1819 = vmatpush1.xpose.msra.mxu0 0.0
    %1820 = vmatprep.subr.mxu0 0.0
    %1821 = vmatpush1.xpose.msra.mxu0 0.0
    %1822 = vmatprep.subr.mxu0 0.0
    %1823 = vmatpush1.xpose.msra.mxu0 0.0
    %1824 = vmatprep.subr.mxu0 0.0
    %1825 = vmatpush1.xpose.msra.mxu0 0.0
    %1826 = vmatprep.subr.mxu0 0.0
    %1827 = vmatpush1.xpose.msra.mxu0 0.0
    %1828 = vmatprep.subr.mxu0 0.0
    %1829 = vmatpush1.xpose.msra.mxu0 0.0
    %1830 = vmatprep.subr.mxu0 0.0
    %1831 = vmatpush1.xpose.msra.mxu0 0.0
    %1832 = vmatprep.subr.mxu0 0.0
    %1833 = vmatpush1.xpose.msra.mxu0 0.0
    %1834 = vmatprep.subr.mxu0 0.0
    %1835 = vmatpush1.xpose.msra.mxu0 0.0
    %1836 = vmatprep.subr.mxu0 0.0
    %1837 = vmatpush1.xpose.msra.mxu0 0.0
    %1838 = vmatprep.mubr.f32.mxu0 0.0
    %1839 = vmatmul.mubr.f32.gmra.mrb[0].mxu0 %v1390
    %v1840 = vpop.f32.mrb[0].mxu0
    %v1841 = vadd.f32 %v1386, %v1840
    %v1842 = vpop.f32.mrb[0].mxu0
    %1843 = vdwg.mxu0
    %v1848 = vcombine.low %v1699, %v1701
    %v1849 = vcombine.low %v1770, %v1772
    %1852 = vst [vmem:[#allocation7] sm:$0xff] %v1848
    %1853 = vst [vmem:[#allocation7 + $0x8] sm:$0xff] %v1849
    %1854 = vst [vmem:[#allocation7 + $0x10] sm:$0xf] %v1841
    %v1855 = vlaneseq
    %v1856 = vand.u32 %v1855, 127
    %v1857 = vadd.s32 %v1856, 128
    %v1858 = vadd.s32 %v1856, 256
    %v1859 = vadd.s32 %v1856, 384
    %v1860 = vadd.s32 %v1856, 512
    %v1861 = vadd.s32 %v315, %v1856
    %v1862 = vadd.s32 %v315, %v1857
    %v1863 = vadd.s32 %v315, %v1858
    %v1864 = vadd.s32 %v315, %v1859
    %v1865 = vadd.s32 %v315, %v1860
    %vm1866 = vcmp.lt.s32.totalorder %v1861, %v396
    %vm1867 = vcmp.lt.s32.totalorder %v1862, %v396
    %vm1868 = vcmp.lt.s32.totalorder %v1863, %v396
    %vm1869 = vcmp.lt.s32.totalorder %v1864, %v396
    %vm1870 = vcmp.lt.s32.totalorder %v1865, %v396
    %v1871 = vsel %vm1866, %v1699, -1e+30
    %v1872 = vsel %vm1867, %v1701, -1e+30
    %v1873 = vsel %vm1868, %v1770, -1e+30
    %v1874 = vsel %vm1869, %v1772, -1e+30
    %v1875 = vsel %vm1870, %v1841, -1e+30
    %v1876 = vld [vmem:[%s7] sm:$0xf]
    %vm1877 = vcmask 1043456
    %v1878 = vsel %vm1877, %v1871, -inf
    %v1879 = vsel %vm1877, %v1872, -inf
    %v1880 = vsel %vm1877, %v1873, -inf
    %v1881 = vsel %vm1877, %v1874, -inf
    %v1882 = vsel %vm1877, %v1875, -inf
    %v1883 = vmax.f32 %v1878, %v1882
    %v1884 = vmax.f32 %v1883, %v1879
    %v1885 = vmax.f32 %v1880, %v1881
    %v1886 = vmax.f32 %v1884, %v1885
    %1887 = vmax.xlane.f32.xlu0 %v1886
    %v1888 = vpop.xlane.xlu0 %1887
    %v1889 = vmax.f32 %v1876, %v1888
    %v1890 = vsub.f32 %v1876, %v1889
    %v1891 = vmul.f32 %v1890, 1.442695
    %v1892 = vpow.pop %v1891
    %1894 = vset.pattern.permute.xlu0 0
    %1895 = vperm.xlu0 %1894, %v1889
    %v1896 = vpop.permute.xlu0 %1895
    %v1898 = vsub.f32 %v1871, %v1896
    %v1899 = vsub.f32 %v1872, %v1896
    %v1900 = vsub.f32 %v1873, %v1896
    %v1901 = vsub.f32 %v1874, %v1896
    %v1902 = vsub.f32 %v1875, %v1896
    %v1903 = vmul.f32 %v1898, 1.442695
    %v1904 = vpow.pop %v1903
    %v1905 = vmul.f32 %v1899, 1.442695
    %v1906 = vpow.pop %v1905
    %v1907 = vmul.f32 %v1900, 1.442695
    %v1908 = vpow.pop %v1907
    %v1909 = vmul.f32 %v1901, 1.442695
    %v1910 = vpow.pop %v1909
    %v1911 = vmul.f32 %v1902, 1.442695
    %v1912 = vpow.pop %v1911
    %v1913 = vld [vmem:[%s8] sm:$0xf]
    %v1914 = vmul.f32 %v1892, %v1913
    %v1915 = vsel %vm1877, %v1904, 0.0
    %v1916 = vsel %vm1877, %v1906, 0.0
    %v1917 = vadd.f32 %v1915, %v1916
    %v1918 = vsel %vm1877, %v1908, 0.0
    %v1919 = vadd.f32 %v1917, %v1918
    %v1920 = vsel %vm1877, %v1910, 0.0
    %v1921 = vadd.f32 %v1919, %v1920
    %v1922 = vsel %vm1877, %v1912, 0.0
    %v1923 = vadd.f32 %v1921, %v1922
    %1924 = vadd.xlane.f32.xlu0 %v1923
    %v1925 = vpop.xlane.xlu0 %1924
    %v1926 = vadd.f32 %v1914, %v1925
    %vm1927 = vcmask 3072
    %1928 = vst.msk [vmem:[%s8] sm:$0xf] %vm1927, %v1926
    %v1929 = vld [vmem:[#allocation8] sm:$0xff]
    %1931 = vset.pattern.permute.xlu0 0
    %1932 = vperm.xlu0 %1931, %v1892
    %v1933 = vpop.permute.xlu0 %1932
    %v1936 = vcombine.high %v1929, %v1929
    %v1938 = vmul.f32 %v1933, %v1929
    %v1939 = vmul.f32 %v1933, %v1936
    %1940 = vmatprep.subr.mxu0 %v638
    %1941 = vmatpush1.msra.mxu0 %v637
    %1942 = vmatprep.subr.mxu0 %v640
    %1943 = vmatpush1.msra.mxu0 %v639
    %1944 = vmatprep.subr.mxu0 %v642
    %1945 = vmatpush1.msra.mxu0 %v641
    %1946 = vmatprep.subr.mxu0 %v644
    %1947 = vmatpush1.msra.mxu0 %v643
    %1948 = vmatprep.subr.mxu0 %v646
    %1949 = vmatpush1.msra.mxu0 %v645
    %1950 = vmatprep.subr.mxu0 %v648
    %1951 = vmatpush1.msra.mxu0 %v647
    %1952 = vmatprep.subr.mxu0 %v650
    %1953 = vmatpush1.msra.mxu0 %v649
    %1954 = vmatprep.subr.mxu0 %v652
    %1955 = vmatpush1.msra.mxu0 %v651
    %1956 = vmatprep.subr.mxu0 %v654
    %1957 = vmatpush1.msra.mxu0 %v653
    %1958 = vmatprep.subr.mxu0 %v656
    %1959 = vmatpush1.msra.mxu0 %v655
    %1960 = vmatprep.subr.mxu0 %v658
    %1961 = vmatpush1.msra.mxu0 %v657
    %1962 = vmatprep.subr.mxu0 %v660
    %1963 = vmatpush1.msra.mxu0 %v659
    %1964 = vmatprep.subr.mxu0 %v662
    %1965 = vmatpush1.msra.mxu0 %v661
    %1966 = vmatprep.subr.mxu0 %v664
    %1967 = vmatpush1.msra.mxu0 %v663
    %1968 = vmatprep.subr.mxu0 %v666
    %1969 = vmatpush1.msra.mxu0 %v665
    %1970 = vmatprep.subr.mxu0 %v668
    %1971 = vmatpush1.msra.mxu0 %v667
    %1972 = vmatprep.subr.mxu0 %v670
    %1973 = vmatpush1.msra.mxu0 %v669
    %1974 = vmatprep.subr.mxu0 %v672
    %1975 = vmatpush1.msra.mxu0 %v671
    %1976 = vmatprep.subr.mxu0 %v674
    %1977 = vmatpush1.msra.mxu0 %v673
    %1978 = vmatprep.subr.mxu0 %v676
    %1979 = vmatpush1.msra.mxu0 %v675
    %1980 = vmatprep.subr.mxu0 %v678
    %1981 = vmatpush1.msra.mxu0 %v677
    %1982 = vmatprep.subr.mxu0 %v680
    %1983 = vmatpush1.msra.mxu0 %v679
    %1984 = vmatprep.subr.mxu0 %v682
    %1985 = vmatpush1.msra.mxu0 %v681
    %1986 = vmatprep.subr.mxu0 %v684
    %1987 = vmatpush1.msra.mxu0 %v683
    %1988 = vmatprep.subr.mxu0 %v686
    %1989 = vmatpush1.msra.mxu0 %v685
    %1990 = vmatprep.subr.mxu0 %v688
    %1991 = vmatpush1.msra.mxu0 %v687
    %1992 = vmatprep.subr.mxu0 %v690
    %1993 = vmatpush1.msra.mxu0 %v689
    %1994 = vmatprep.subr.mxu0 %v692
    %1995 = vmatpush1.msra.mxu0 %v691
    %1996 = vmatprep.subr.mxu0 %v694
    %1997 = vmatpush1.msra.mxu0 %v693
    %1998 = vmatprep.subr.mxu0 %v696
    %1999 = vmatpush1.msra.mxu0 %v695
    %2000 = vmatprep.subr.mxu0 %v698
    %2001 = vmatpush1.msra.mxu0 %v697
    %2002 = vmatprep.subr.mxu0 %v700
    %2003 = vmatpush1.msra.mxu0 %v699
    %2004 = vmatprep.mubr.f32.mxu0 %v1906
    %2005 = vmatmul.mubr.f32.gmra.mrb[0].mxu0 %v1904
    %v2006 = vpop.f32.mrb[0].mxu0
    %v2007 = vadd.f32 0.0, %v2006
    %v2008 = vpop.f32.mrb[0].mxu0
    %v2009 = vadd.f32 0.0, %v2008
    %2010 = vdwg.mxu0
    %2011 = vmatprep.subr.mxu0 %v702
    %2012 = vmatpush1.msra.mxu0 %v701
    %2013 = vmatprep.subr.mxu0 %v704
    %2014 = vmatpush1.msra.mxu0 %v703
    %2015 = vmatprep.subr.mxu0 %v706
    %2016 = vmatpush1.msra.mxu0 %v705
    %2017 = vmatprep.subr.mxu0 %v708
    %2018 = vmatpush1.msra.mxu0 %v707
    %2019 = vmatprep.subr.mxu0 %v710
    %2020 = vmatpush1.msra.mxu0 %v709
    %2021 = vmatprep.subr.mxu0 %v712
    %2022 = vmatpush1.msra.mxu0 %v711
    %2023 = vmatprep.subr.mxu0 %v714
    %2024 = vmatpush1.msra.mxu0 %v713
    %2025 = vmatprep.subr.mxu0 %v716
    %2026 = vmatpush1.msra.mxu0 %v715
    %2027 = vmatprep.subr.mxu0 %v718
    %2028 = vmatpush1.msra.mxu0 %v717
    %2029 = vmatprep.subr.mxu0 %v720
    %2030 = vmatpush1.msra.mxu0 %v719
    %2031 = vmatprep.subr.mxu0 %v722
    %2032 = vmatpush1.msra.mxu0 %v721
    %2033 = vmatprep.subr.mxu0 %v724
    %2034 = vmatpush1.msra.mxu0 %v723
    %2035 = vmatprep.subr.mxu0 %v726
    %2036 = vmatpush1.msra.mxu0 %v725
    %2037 = vmatprep.subr.mxu0 %v728
    %2038 = vmatpush1.msra.mxu0 %v727
    %2039 = vmatprep.subr.mxu0 %v730
    %2040 = vmatpush1.msra.mxu0 %v729
    %2041 = vmatprep.subr.mxu0 %v732
    %2042 = vmatpush1.msra.mxu0 %v731
    %2043 = vmatprep.subr.mxu0 %v734
    %2044 = vmatpush1.msra.mxu0 %v733
    %2045 = vmatprep.subr.mxu0 %v736
    %2046 = vmatpush1.msra.mxu0 %v735
    %2047 = vmatprep.subr.mxu0 %v738
    %2048 = vmatpush1.msra.mxu0 %v737
    %2049 = vmatprep.subr.mxu0 %v740
    %2050 = vmatpush1.msra.mxu0 %v739
    %2051 = vmatprep.subr.mxu0 %v742
    %2052 = vmatpush1.msra.mxu0 %v741
    %2053 = vmatprep.subr.mxu0 %v744
    %2054 = vmatpush1.msra.mxu0 %v743
    %2055 = vmatprep.subr.mxu0 %v746
    %2056 = vmatpush1.msra.mxu0 %v745
    %2057 = vmatprep.subr.mxu0 %v748
    %2058 = vmatpush1.msra.mxu0 %v747
    %2059 = vmatprep.subr.mxu0 %v750
    %2060 = vmatpush1.msra.mxu0 %v749
    %2061 = vmatprep.subr.mxu0 %v752
    %2062 = vmatpush1.msra.mxu0 %v751
    %2063 = vmatprep.subr.mxu0 %v754
    %2064 = vmatpush1.msra.mxu0 %v753
    %2065 = vmatprep.subr.mxu0 %v756
    %2066 = vmatpush1.msra.mxu0 %v755
    %2067 = vmatprep.subr.mxu0 %v758
    %2068 = vmatpush1.msra.mxu0 %v757
    %2069 = vmatprep.subr.mxu0 %v760
    %2070 = vmatpush1.msra.mxu0 %v759
    %2071 = vmatprep.subr.mxu0 %v762
    %2072 = vmatpush1.msra.mxu0 %v761
    %2073 = vmatprep.subr.mxu0 %v764
    %2074 = vmatpush1.msra.mxu0 %v763
    %2075 = vmatprep.mubr.f32.mxu0 %v1910
    %2076 = vmatmul.mubr.f32.gmra.mrb[0].mxu0 %v1908
    %v2077 = vpop.f32.mrb[0].mxu0
    %v2078 = vadd.f32 %v2007, %v2077
    %v2079 = vpop.f32.mrb[0].mxu0
    %v2080 = vadd.f32 %v2009, %v2079
    %2081 = vdwg.mxu0
    %2082 = vmatprep.subr.mxu0 %v766
    %2083 = vmatpush1.msra.mxu0 %v765
    %2084 = vmatprep.subr.mxu0 %v768
    %2085 = vmatpush1.msra.mxu0 %v767
    %2086 = vmatprep.subr.mxu0 %v770
    %2087 = vmatpush1.msra.mxu0 %v769
    %2088 = vmatprep.subr.mxu0 %v772
    %2089 = vmatpush1.msra.mxu0 %v771
    %2090 = vmatprep.subr.mxu0 %v774
    %2091 = vmatpush1.msra.mxu0 %v773
    %2092 = vmatprep.subr.mxu0 %v776
    %2093 = vmatpush1.msra.mxu0 %v775
    %2094 = vmatprep.subr.mxu0 %v778
    %2095 = vmatpush1.msra.mxu0 %v777
    %2096 = vmatprep.subr.mxu0 %v780
    %2097 = vmatpush1.msra.mxu0 %v779
    %2098 = vmatprep.subr.mxu0 %v782
    %2099 = vmatpush1.msra.mxu0 %v781
    %2100 = vmatprep.subr.mxu0 %v784
    %2101 = vmatpush1.msra.mxu0 %v783
    %2102 = vmatprep.subr.mxu0 %v786
    %2103 = vmatpush1.msra.mxu0 %v785
    %2104 = vmatprep.subr.mxu0 %v788
    %2105 = vmatpush1.msra.mxu0 %v787
    %2106 = vmatprep.subr.mxu0 %v790
    %2107 = vmatpush1.msra.mxu0 %v789
    %2108 = vmatprep.subr.mxu0 %v792
    %2109 = vmatpush1.msra.mxu0 %v791
    %2110 = vmatprep.subr.mxu0 %v794
    %2111 = vmatpush1.msra.mxu0 %v793
    %2112 = vmatprep.subr.mxu0 %v796
    %2113 = vmatpush1.msra.mxu0 %v795
    %2114 = vmatprep.subr.mxu0 0.0
    %2115 = vmatpush1.msra.mxu0 0.0
    %2116 = vmatprep.subr.mxu0 0.0
    %2117 = vmatpush1.msra.mxu0 0.0
    %2118 = vmatprep.subr.mxu0 0.0
    %2119 = vmatpush1.msra.mxu0 0.0
    %2120 = vmatprep.subr.mxu0 0.0
    %2121 = vmatpush1.msra.mxu0 0.0
    %2122 = vmatprep.subr.mxu0 0.0
    %2123 = vmatpush1.msra.mxu0 0.0
    %2124 = vmatprep.subr.mxu0 0.0
    %2125 = vmatpush1.msra.mxu0 0.0
    %2126 = vmatprep.subr.mxu0 0.0
    %2127 = vmatpush1.msra.mxu0 0.0
    %2128 = vmatprep.subr.mxu0 0.0
    %2129 = vmatpush1.msra.mxu0 0.0
    %2130 = vmatprep.subr.mxu0 0.0
    %2131 = vmatpush1.msra.mxu0 0.0
    %2132 = vmatprep.subr.mxu0 0.0
    %2133 = vmatpush1.msra.mxu0 0.0
    %2134 = vmatprep.subr.mxu0 0.0
    %2135 = vmatpush1.msra.mxu0 0.0
    %2136 = vmatprep.subr.mxu0 0.0
    %2137 = vmatpush1.msra.mxu0 0.0
    %2138 = vmatprep.subr.mxu0 0.0
    %2139 = vmatpush1.msra.mxu0 0.0
    %2140 = vmatprep.subr.mxu0 0.0
    %2141 = vmatpush1.msra.mxu0 0.0
    %2142 = vmatprep.subr.mxu0 0.0
    %2143 = vmatpush1.msra.mxu0 0.0
    %2144 = vmatprep.subr.mxu0 0.0
    %2145 = vmatpush1.msra.mxu0 0.0
    %2146 = vmatprep.mubr.f32.mxu0 0.0
    %2147 = vmatmul.mubr.f32.gmra.mrb[0].mxu0 %v1912
    %v2148 = vpop.f32.mrb[0].mxu0
    %v2149 = vadd.f32 %v2078, %v2148
    %v2150 = vpop.f32.mrb[0].mxu0
    %v2151 = vadd.f32 %v2080, %v2150
    %2152 = vdwg.mxu0
    %v2153 = vadd.f32 %v1938, %v2149
    %v2154 = vadd.f32 %v1939, %v2151
    %v2157 = vcombine.low %v2153, %v2154
    %2159 = vst [vmem:[#allocation8] sm:$0xff] %v2157
    %2160 = vst.msk [vmem:[%s7] sm:$0xf] %vm1927, %v1889
    // Predicated region
    $region30: #{tpu_custom_call.1} parent=1 // pred_check
      _
    $region31: #{tpu_custom_call.1} parent=1 // pred_check_branch
      %2162 = sbr.rel (0) target = $region33
    $region32: #{tpu_custom_call.1} parent=1 // pred_region
      %s2163 = sadd.s32 0, 0
      %s2164 = smul.u32 5, %s2163
      %s2166 = ssub.s32 320, 320
      %2167 = vsyncadd [#allocation6], %s2166
      %s2168 = smul.addr %s2164, 64
      %s2169 = scalar_lea.hbm %s6, %s2168
      %s2171 = sshll.u32 [#allocation7], 4
      %s2172 = int_to_ptr.vmem [resolvable:$true] %s2171
      %2174 = dma.vmem_to_hbm [thread:$0]  %s2172, 320, %s2169, [#allocation6]
    $region33: #{tpu_custom_call.1} parent=1 // pred_fallthru
      _
    // Predicated region
    $region34: #{tpu_custom_call.1} parent=1 // pred_check
      _
    $region35: #{tpu_custom_call.1} parent=1 // pred_check_branch
      %2176 = sbr.rel (0) target = $region37
    $region36: #{tpu_custom_call.1} parent=1 // pred_region
      _
    $region37: #{tpu_custom_call.1} parent=1 // pred_fallthru
      _
    // Predicated region
    $region38: #{tpu_custom_call.1} parent=1 // pred_check
      _
    $region39: #{tpu_custom_call.1} parent=1 // pred_check_branch
      %2178 = sbr.rel (0) target = $region41
    $region40: #{tpu_custom_call.1} parent=1 // pred_region
      _
    $region41: #{tpu_custom_call.1} parent=1 // pred_fallthru
      _
    // Predicated region
    $region42: #{tpu_custom_call.1} parent=1 // pred_check
      _
    $region43: #{tpu_custom_call.1} parent=1 // pred_check_branch
      %2180 = sbr.rel (0) target = $region45
    $region44: #{tpu_custom_call.1} parent=1 // pred_region
      %s2182 = ssub.s32 128, 128
      %2183 = vsyncadd [#allocation9], %s2182
      %s2185 = sshll.u32 [#allocation8], 4
      %s2186 = int_to_ptr.vmem [resolvable:$true] %s2185
      %2188 = dma.vmem_to_hbm [thread:$0]  %s2186, 128, %s9, [#allocation9]
    $region45: #{tpu_custom_call.1} parent=1 // pred_fallthru
      _
    // Predicated region
    $region46: #{tpu_custom_call.1} parent=1 // pred_check
      _
    $region47: #{tpu_custom_call.1} parent=1 // pred_check_branch
      %2190 = sbr.rel (0) target = $region49
    $region48: #{tpu_custom_call.1} parent=1 // pred_region
      %2191 = dma.done [#allocation6], 320
    $region49: #{tpu_custom_call.1} parent=1 // pred_fallthru
      _
    // Predicated region
    $region50: #{tpu_custom_call.1} parent=1 // pred_check
      _
    $region51: #{tpu_custom_call.1} parent=1 // pred_check_branch
      %2193 = sbr.rel (0) target = $region53
    $region52: #{tpu_custom_call.1} parent=1 // pred_region
      _
    $region53: #{tpu_custom_call.1} parent=1 // pred_fallthru
      _
    // Predicated region
    $region54: #{tpu_custom_call.1} parent=1 // pred_check
      _
    $region55: #{tpu_custom_call.1} parent=1 // pred_check_branch
      %2195 = sbr.rel (0) target = $region57
    $region56: #{tpu_custom_call.1} parent=1 // pred_region
      _
    $region57: #{tpu_custom_call.1} parent=1 // pred_fallthru
      _
    // Predicated region
    $region58: #{tpu_custom_call.1} parent=1 // pred_check
      _
    $region59: #{tpu_custom_call.1} parent=1 // pred_check_branch
      %2197 = sbr.rel (0) target = $region61
    $region60: #{tpu_custom_call.1} parent=1 // pred_region
      %2198 = dma.done [#allocation9], 128
    $region61: #{tpu_custom_call.1} parent=1 // pred_fallthru
      _
    %2199 = vsyncpa [#allocation5], 1
    %2200 = vsyncpa [#allocation6], 1
    %2201 = vsyncpa [#allocation9], 1

</llo_original>
